<compile_context>
chip_gen: v7x
topology: tpu7x:2x2x1
jax: 0.10.0
libtpu: 0.0.40
codegen_flags: <defaults>
</compile_context>

<pallas_src>
import functools

import jax
import jax.numpy as jnp
from jax import lax
from jax.experimental import pallas as pl
from jax.experimental.pallas import tpu as pltpu


_NT = (((1,), (1,)), ((), ()))   # contract last dims of both operands: A @ B^T


def _nmf2d_kernel(x_ref, basesT_ref, y_ref, basesT_out_ref, *,
                  inv_t, steps, eps, mxu_dtype):
    f32 = jnp.float32
    # x is (D, N) and is never transposed: every product contracts D or N
    # directly (plain matmul or A @ B^T dot_general).
    x = x_ref[0].astype(f32)                       # (D, N) f32
    x_mx = x.astype(mxu_dtype)                     # bf16 MXU operand copy (hoisted)
    # bases carried transposed (R, D), coef carried transposed (R, N):
    # lane dims are D and N -> lane-dense vregs for all elementwise updates.
    basesT = basesT_ref[0].astype(f32)             # (R, D) — no transpose needed

    def recip(v):
        return pl.reciprocal(v, approx=True)       # EUP slot, frees the VALU

    # local_inference: coef = softmax(inv_t * x^T @ bases, dim=-1), transposed.
    # inv_t is folded into the small (R, D) operand; explicit HIGHEST precision
    # keeps the logits at f32 accuracy (inv_t = 100 amplifies bf16 rounding
    # into the near-argmax softmax).
    logitsT = jnp.dot(inv_t * basesT, x, preferred_element_type=f32,
                      precision=lax.Precision.HIGHEST)                    # (R, N)
    logitsT = logitsT - jnp.max(logitsT, axis=0, keepdims=True)
    unnorm = jnp.exp(logitsT)
    # Exact division for the one-off softmax normalization; approx reciprocals
    # are reserved for the per-step updates.
    coefT = unnorm / jnp.sum(unnorm, axis=0, keepdims=True)               # (R, N)

    def coef_update(basesT_mx, coefT):
        # coef <- coef * (x^T bases) / (coef (bases^T bases) + eps)   [transposed]
        numer = jnp.dot(basesT_mx, x_mx, preferred_element_type=f32)              # (R, N)
        btb = lax.dot_general(basesT_mx, basesT_mx, _NT,
                              preferred_element_type=f32)                         # (R, R)
        denom = jnp.dot(btb.astype(mxu_dtype), coefT.astype(mxu_dtype),
                        preferred_element_type=f32)                               # (R, N)
        return coefT * numer * recip(denom + eps)

    def step(carry):
        basesT, coefT = carry
        basesT_mx = basesT.astype(mxu_dtype)
        coefT = coef_update(basesT_mx, coefT)
        # bases <- bases * (x coef) / (bases (coef^T coef) + eps)     [transposed]
        coefT_mx = coefT.astype(mxu_dtype)
        numer = lax.dot_general(coefT_mx, x_mx, _NT,
                                preferred_element_type=f32)                       # (R, D)
        ctc = lax.dot_general(coefT_mx, coefT_mx, _NT,
                              preferred_element_type=f32)                         # (R, R)
        denom = jnp.dot(ctc.astype(mxu_dtype), basesT_mx,
                        preferred_element_type=f32)                               # (R, D)
        basesT = basesT * numer * recip(denom + eps)
        return basesT, coefT

    # Steps are serially dependent: unrolling buys no cross-iteration overlap,
    # so a rolled fori_loop bounds live ranges and scheduling pressure.
    basesT, coefT = lax.fori_loop(0, steps, lambda _, c: step(c),
                                  (basesT, coefT))

    # compute_coef: one extra coef refinement.
    coefT = coef_update(basesT.astype(mxu_dtype), coefT)

    # reconstruction: y = bases @ coef^T -> (D, N), lane-dense output block.
    bases_mx = basesT.astype(mxu_dtype).T          # (D, R) — only transpose left
    y = jnp.dot(bases_mx, coefT.astype(mxu_dtype), preferred_element_type=f32)
    y_ref[0] = y.astype(y_ref.dtype)
    basesT_out_ref[0] = basesT.astype(basesT_out_ref.dtype)


def build_bases(key, B, S, D, R, dtype=jnp.float32):
    """NMF2D._build_bases in the transposed (B*S, R, D) layout.

    Uniform random bases, L2-normalized along D (equivalent to PyTorch's
    F.normalize(dim=1) on the (D, R) layout)."""
    basesT = jax.random.uniform(key, (B * S, R, D), dtype=dtype)
    norm = jnp.sqrt(jnp.sum(basesT * basesT, axis=-1, keepdims=True))
    return basesT / jnp.maximum(norm, 1e-12)


def _vmem_budget_bytes():
    """Generation-aware usable-VMEM cap (physical VMEM minus headroom)."""
    try:
        phys = int(pltpu.get_tpu_info().vmem_capacity_bytes)
    except Exception:
        phys = 64 << 20                     # conservative fallback (v7x-sized)
    headroom = max(phys // 8, 8 << 20) + (8 << 20)
    # ~104 MiB usable on v5e/v6e (128 MiB physical), ~48 MiB on v7x (64 MiB).
    return max(phys - headroom, 32 << 20)


@functools.partial(jax.jit,
                   static_argnames=("S", "inv_t", "steps", "eps", "out_dtype"))
def matrix_decomposition_2d(x, basesT, *, S=1, inv_t=100.0, steps=7, eps=1e-6,
                            out_dtype=None):
    """Forward pass of _MatrixDecomposition2DBase (spatial=True, NMF2D, eval).

    basesT is in the transposed (B*S, R, D) layout; the returned bases keep
    that layout as (B, S, R, D).  out_dtype=jnp.bfloat16 halves the y HBM
    write stream; default keeps x.dtype to match the PyTorch module exactly.
    """
    B, C, H, W = x.shape
    D = C // S
    N = H * W
    BS = B * S
    R = basesT.shape[-2]
    x_flat = x.reshape(BS, D, N)
    y_dtype = jnp.dtype(out_dtype) if out_dtype is not None else x.dtype

    kernel = functools.partial(
        _nmf2d_kernel, inv_t=float(inv_t), steps=int(steps), eps=float(eps),
        mxu_dtype=jnp.bfloat16)

    # ---- VMEM budgeting (generation-aware) --------------------------------
    f32b, mxb = 4, 2
    xib = jnp.dtype(x.dtype).itemsize
    yib = jnp.dtype(y_dtype).itemsize
    bib = jnp.dtype(basesT.dtype).itemsize

    def footprint(n_bufs):
        return (
            n_bufs * D * N * xib                  # x pipeline blocks
            + n_bufs * D * N * yib                # y pipeline blocks
            + 4 * R * D * bib                     # bases in/out pipeline blocks
            + D * N * (f32b + mxb)                # in-kernel x f32 + bf16 copy
            + D * N * f32b                        # y f32 intermediate
            + 4 * R * N * f32b + 2 * R * N * mxb  # coefT / numer / denom (+bf16)
            + 4 * R * D * f32b + 2 * R * D * mxb  # basesT / numer / denom (+bf16)
            + 4 * R * R * f32b                    # btb / ctc
        )

    vmem_cap = _vmem_budget_bytes()
    # If double-buffered x/y blocks blow the budget, drop to single-buffered
    # big blocks (exposed DMA, but ~O(steps*R*D*N) MXU flops per slice to hide
    # it) instead of shrinking the slice.
    single_buffer = footprint(2) + (8 << 20) > vmem_cap
    n_bufs = 1 if single_buffer else 2
    vmem_limit = int(min(max(footprint(n_bufs) + (8 << 20), 32 << 20), vmem_cap))

    def big_spec(shape, index_map):
        if single_buffer:
            return pl.BlockSpec(shape, index_map, pipeline_mode=pl.Buffered(1))
        return pl.BlockSpec(shape, index_map)

    # Advisory cost model so XLA schedules surrounding ops correctly.
    flops = BS * 2 * (steps + 2) * (2 * R * D * N + R * R * (N + D))
    bytes_accessed = BS * (D * N * (xib + yib) + 2 * R * D * bib)
    cost = pl.CostEstimate(flops=int(flops),
                           transcendentals=int(BS * R * N),
                           bytes_accessed=int(bytes_accessed))

    y_flat, basesT_out = pl.pallas_call(
        kernel,
        out_shape=(
            jax.ShapeDtypeStruct((BS, D, N), y_dtype),
            jax.ShapeDtypeStruct((BS, R, D), basesT.dtype),
        ),
        grid_spec=pltpu.PrefetchScalarGridSpec(
            num_scalar_prefetch=0,
            grid=(BS,),
            in_specs=[
                big_spec((1, D, N), lambda b: (b, 0, 0)),
                pl.BlockSpec((1, R, D), lambda b: (b, 0, 0)),
            ],
            out_specs=[
                big_spec((1, D, N), lambda b: (b, 0, 0)),
                pl.BlockSpec((1, R, D), lambda b: (b, 0, 0)),
            ],
        ),
        # bases is read once and fully overwritten -> reuse its HBM buffer.
        input_output_aliases={1: 1},
        compiler_params=pltpu.CompilerParams(
            dimension_semantics=("parallel",),   # BS axis -> both TCs on v7x
            vmem_limit_bytes=vmem_limit,
        ),
        cost_estimate=cost,
    )(x_flat, basesT)

    y = y_flat.reshape(B, C, H, W)
    basesT_out = basesT_out.reshape(B, S, R, D)
    return y, basesT_out


def _reference(x, basesT, *, S=1, inv_t=100.0, steps=7, eps=1e-6, mxu_dtype=None):
    """Pure-JAX reference mirroring the PyTorch forward (eval mode).

    mxu_dtype=None reproduces the plain f32 PyTorch math (HIGHEST precision);
    mxu_dtype=bfloat16 mirrors the kernel's bf16-operand / f32-accumulate
    matmul precision (the initial inv_t-scaled logits stay full f32 in both,
    matching the kernel)."""
    B, C, H, W = x.shape
    D = C // S
    N = H * W
    xf = x.reshape(B * S, D, N).astype(jnp.float32)
    bases = jnp.swapaxes(basesT, 1, 2).astype(jnp.float32)   # (BS, D, R)
    xt = jnp.swapaxes(xf, 1, 2)

    def mm(eq, a, b):
        if mxu_dtype is not None:
            a, b = a.astype(mxu_dtype), b.astype(mxu_dtype)
            return jnp.einsum(eq, a, b, preferred_element_type=jnp.float32)
        return jnp.einsum(eq, a, b, preferred_element_type=jnp.float32,
                          precision=lax.Precision.HIGHEST)

    logits = inv_t * jnp.einsum("bnd,bdr->bnr", xt, bases,
                                preferred_element_type=jnp.float32,
                                precision=lax.Precision.HIGHEST)
    coef = jax.nn.softmax(logits, axis=-1)
    for _ in range(steps):
        numer = mm("bnd,bdr->bnr", xt, bases)
        denom = mm("bnr,brq->bnq", coef, mm("bdr,bdq->brq", bases, bases))
        coef = coef * numer / (denom + eps)
        numer = mm("bdn,bnr->bdr", xf, coef)
        denom = mm("bdr,brq->bdq", bases, mm("bnr,bnq->brq", coef, coef))
        bases = bases * numer / (denom + eps)
    numer = mm("bnd,bdr->bnr", xt, bases)
    denom = mm("bnr,brq->bnq", coef, mm("bdr,bdq->brq", bases, bases))
    coef = coef * numer / (denom + eps)
    y = mm("bdr,bnr->bdn", bases, coef)
    return y.reshape(B, C, H, W)


if __name__ == "__main__":
    # Module hyper-params (defaults, eval mode): SPATIAL=True, MD_S=1,
    # INV_T=100, EVAL_STEPS=7, RAND_INIT=True; small smoke-test shapes.
    B, C, H, W = 2, 32, 16, 8      # -> D = 32, N = 128
    S, R = 1, 16
    inv_t, eval_steps, eps = 100.0, 7, 1e-6

    key = jax.random.PRNGKey(0)
    kx, kb = jax.random.split(key)
    x = jax.random.uniform(kx, (B, C, H, W), dtype=jnp.float32)
    basesT0 = build_bases(kb, B, S, C // S, R)     # (B*S, R, D) transposed layout

    # References first (plain-f32 semantic reference and a bf16-precision-
    # matched reference for the structural check).
    y_ref_mx = _reference(x, basesT0, S=S, inv_t=inv_t, steps=eval_steps, eps=eps,
                          mxu_dtype=jnp.bfloat16)
    y_ref_f32 = _reference(x, basesT0, S=S, inv_t=inv_t, steps=eval_steps, eps=eps,
                           mxu_dtype=None)

    y, basesT_out = matrix_decomposition_2d(
        x, basesT0, S=S, inv_t=inv_t, steps=eval_steps, eps=eps)
    y, basesT_out = jax.block_until_ready((y, basesT_out))

    assert y.shape == (B, C, H, W)
    assert basesT_out.shape == (B, S, R, C // S)
    assert bool(jnp.all(jnp.isfinite(y)))
    assert bool(jnp.all(jnp.isfinite(basesT_out)))
    # Structural check vs. the precision-matched reference.
    assert bool(jnp.allclose(y, y_ref_mx, rtol=3e-2, atol=3e-2))
    # Semantic check vs. the plain f32 (PyTorch-equivalent) reference.
    assert bool(jnp.allclose(y, y_ref_f32, rtol=6e-2, atol=6e-2))

    print("KERNEL_OK")
</pallas_src>

<mosaic_0001>
module attributes {stable_mosaic.version = 11 : i64} {
  func.func @_nmf2d_kernel(%arg0: i32, %arg1: memref<1x32x128xf32, #tpu.memory_space<vmem>>, %arg2: memref<1x16x32xf32, #tpu.memory_space<vmem>>, %arg3: memref<1x32x128xf32, #tpu.memory_space<vmem>>, %arg4: memref<1x16x32xf32, #tpu.memory_space<vmem>>) attributes {dimension_semantics = [#tpu.dimension_semantics<parallel>], iteration_bounds = array<i64: 2>, scalar_prefetch = 0 : i64, scratch_operands = 0 : i64, tpu.core_type = #tpu.core_type<tc>, window_params = [{transform_indices = @transform_0, window_bounds = array<i64: 1, 32, 128>}, {transform_indices = @transform_1, window_bounds = array<i64: 1, 16, 32>}, {transform_indices = @transform_2, window_bounds = array<i64: 1, 32, 128>}, {transform_indices = @transform_3, window_bounds = array<i64: 1, 16, 32>}]} {
    %c0 = arith.constant 0 : index
    %c0_0 = arith.constant 0 : index
    %c0_1 = arith.constant 0 : index
    %0 = vector.load %arg1[%c0, %c0_0, %c0_1] : memref<1x32x128xf32, #tpu.memory_space<vmem>>, vector<1x32x128xf32>
    %1 = vector.shape_cast %0 : vector<1x32x128xf32> to vector<32x128xf32>
    %2 = arith.truncf %1 : vector<32x128xf32> to vector<32x128xbf16>
    %c0_2 = arith.constant 0 : index
    %c0_3 = arith.constant 0 : index
    %c0_4 = arith.constant 0 : index
    %3 = vector.load %arg2[%c0_2, %c0_3, %c0_4] : memref<1x16x32xf32, #tpu.memory_space<vmem>>, vector<1x16x32xf32>
    %4 = vector.shape_cast %3 : vector<1x16x32xf32> to vector<16x32xf32>
    %cst = arith.constant 1.000000e+02 : f32
    %5 = vector.broadcast %cst : f32 to vector<16x32xf32>
    %6 = arith.mulf %5, %4 : vector<16x32xf32>
    %cst_5 = arith.constant dense<0.000000e+00> : vector<16x128xf32>
    %7 = tpu.matmul %6, %1, %cst_5 {dimension_numbers = #tpu.dot_dimension_numbers<[1], [0], [0], [1], [0, 0, 1, 1], [], []>, precision = #tpu.contract_precision<fp32>} : vector<16x32xf32>, vector<32x128xf32>, vector<16x128xf32> -> vector<16x128xf32>
    %cst_6 = arith.constant dense<0xFF800000> : vector<128xf32>
    %8 = vector.multi_reduction <maximumf>, %7, %cst_6 [0] : vector<16x128xf32> to vector<128xf32>
    %9 = vector.shape_cast %8 : vector<128xf32> to vector<1x128xf32>
    %10 = vector.broadcast %9 : vector<1x128xf32> to vector<16x128xf32>
    %11 = arith.subf %7, %10 : vector<16x128xf32>
    %12 = math.exp %11 : vector<16x128xf32>
    %cst_7 = arith.constant dense<0.000000e+00> : vector<128xf32>
    %13 = vector.multi_reduction <add>, %12, %cst_7 [0] : vector<16x128xf32> to vector<128xf32>
    %14 = vector.shape_cast %13 : vector<128xf32> to vector<1x128xf32>
    %15 = vector.broadcast %14 : vector<1x128xf32> to vector<16x128xf32>
    %16 = arith.divf %12, %15 : vector<16x128xf32>
    %c0_i32 = arith.constant 0 : i32
    %c7_i32 = arith.constant 7 : i32
    %17 = arith.addi %c0_i32, %c7_i32 : i32
    %c1_i32 = arith.constant 1 : i32
    %18:2 = scf.for %arg5 = %c0_i32 to %17 step %c1_i32 iter_args(%arg6 = %4, %arg7 = %16) -> (vector<16x32xf32>, vector<16x128xf32>)  : i32 {
      %40 = arith.truncf %arg6 : vector<16x32xf32> to vector<16x32xbf16>
      %cst_19 = arith.constant dense<0.000000e+00> : vector<16x128xf32>
      %41 = tpu.matmul %40, %2, %cst_19 {dimension_numbers = #tpu.dot_dimension_numbers<[1], [0], [0], [1], [0, 0, 1, 1], [], []>} : vector<16x32xbf16>, vector<32x128xbf16>, vector<16x128xf32> -> vector<16x128xf32>
      %cst_20 = arith.constant dense<0.000000e+00> : vector<16x16xf32>
      %42 = tpu.matmul %40, %40, %cst_20 {dimension_numbers = #tpu.dot_dimension_numbers<[1], [1], [0], [0], [0, 0, 1, 0], [], []>} : vector<16x32xbf16>, vector<16x32xbf16>, vector<16x16xf32> -> vector<16x16xf32>
      %43 = arith.truncf %42 : vector<16x16xf32> to vector<16x16xbf16>
      %44 = arith.truncf %arg7 : vector<16x128xf32> to vector<16x128xbf16>
      %cst_21 = arith.constant dense<0.000000e+00> : vector<16x128xf32>
      %45 = tpu.matmul %43, %44, %cst_21 {dimension_numbers = #tpu.dot_dimension_numbers<[1], [0], [0], [1], [0, 0, 1, 1], [], []>} : vector<16x16xbf16>, vector<16x128xbf16>, vector<16x128xf32> -> vector<16x128xf32>
      %46 = arith.mulf %arg7, %41 : vector<16x128xf32>
      %cst_22 = arith.constant 9.99999997E-7 : f32
      %47 = vector.broadcast %cst_22 : f32 to vector<16x128xf32>
      %48 = arith.addf %45, %47 : vector<16x128xf32>
      %49 = tpu.reciprocal %48 {approx = true} : vector<16x128xf32> -> vector<16x128xf32>
      %50 = arith.mulf %46, %49 : vector<16x128xf32>
      %51 = arith.truncf %50 : vector<16x128xf32> to vector<16x128xbf16>
      %cst_23 = arith.constant dense<0.000000e+00> : vector<16x32xf32>
      %52 = tpu.matmul %51, %2, %cst_23 {dimension_numbers = #tpu.dot_dimension_numbers<[1], [1], [0], [0], [0, 0, 1, 0], [], []>} : vector<16x128xbf16>, vector<32x128xbf16>, vector<16x32xf32> -> vector<16x32xf32>
      %cst_24 = arith.constant dense<0.000000e+00> : vector<16x16xf32>
      %53 = tpu.matmul %51, %51, %cst_24 {dimension_numbers = #tpu.dot_dimension_numbers<[1], [1], [0], [0], [0, 0, 1, 0], [], []>} : vector<16x128xbf16>, vector<16x128xbf16>, vector<16x16xf32> -> vector<16x16xf32>
      %54 = arith.truncf %53 : vector<16x16xf32> to vector<16x16xbf16>
      %cst_25 = arith.constant dense<0.000000e+00> : vector<16x32xf32>
      %55 = tpu.matmul %54, %40, %cst_25 {dimension_numbers = #tpu.dot_dimension_numbers<[1], [0], [0], [1], [0, 0, 1, 1], [], []>} : vector<16x16xbf16>, vector<16x32xbf16>, vector<16x32xf32> -> vector<16x32xf32>
      %56 = arith.mulf %arg6, %52 : vector<16x32xf32>
      %cst_26 = arith.constant 9.99999997E-7 : f32
      %57 = vector.broadcast %cst_26 : f32 to vector<16x32xf32>
      %58 = arith.addf %55, %57 : vector<16x32xf32>
      %59 = tpu.reciprocal %58 {approx = true} : vector<16x32xf32> -> vector<16x32xf32>
      %60 = arith.mulf %56, %59 : vector<16x32xf32>
      scf.yield %60, %50 : vector<16x32xf32>, vector<16x128xf32>
    }
    %19 = arith.truncf %18#0 : vector<16x32xf32> to vector<16x32xbf16>
    %cst_8 = arith.constant dense<0.000000e+00> : vector<16x128xf32>
    %20 = tpu.matmul %19, %2, %cst_8 {dimension_numbers = #tpu.dot_dimension_numbers<[1], [0], [0], [1], [0, 0, 1, 1], [], []>} : vector<16x32xbf16>, vector<32x128xbf16>, vector<16x128xf32> -> vector<16x128xf32>
    %cst_9 = arith.constant dense<0.000000e+00> : vector<16x16xf32>
    %21 = tpu.matmul %19, %19, %cst_9 {dimension_numbers = #tpu.dot_dimension_numbers<[1], [1], [0], [0], [0, 0, 1, 0], [], []>} : vector<16x32xbf16>, vector<16x32xbf16>, vector<16x16xf32> -> vector<16x16xf32>
    %22 = arith.truncf %21 : vector<16x16xf32> to vector<16x16xbf16>
    %23 = arith.truncf %18#1 : vector<16x128xf32> to vector<16x128xbf16>
    %cst_10 = arith.constant dense<0.000000e+00> : vector<16x128xf32>
    %24 = tpu.matmul %22, %23, %cst_10 {dimension_numbers = #tpu.dot_dimension_numbers<[1], [0], [0], [1], [0, 0, 1, 1], [], []>} : vector<16x16xbf16>, vector<16x128xbf16>, vector<16x128xf32> -> vector<16x128xf32>
    %25 = arith.mulf %18#1, %20 : vector<16x128xf32>
    %cst_11 = arith.constant 9.99999997E-7 : f32
    %26 = vector.broadcast %cst_11 : f32 to vector<16x128xf32>
    %27 = arith.addf %24, %26 : vector<16x128xf32>
    %28 = tpu.reciprocal %27 {approx = true} : vector<16x128xf32> -> vector<16x128xf32>
    %29 = arith.mulf %25, %28 : vector<16x128xf32>
    %30 = arith.truncf %18#0 : vector<16x32xf32> to vector<16x32xbf16>
    %31 = tpu.transpose %30, [1, 0] : vector<16x32xbf16> -> vector<32x16xbf16>
    %32 = arith.truncf %29 : vector<16x128xf32> to vector<16x128xbf16>
    %cst_12 = arith.constant dense<0.000000e+00> : vector<32x128xf32>
    %33 = tpu.matmul %31, %32, %cst_12 {dimension_numbers = #tpu.dot_dimension_numbers<[1], [0], [0], [1], [0, 0, 1, 1], [], []>} : vector<32x16xbf16>, vector<16x128xbf16>, vector<32x128xf32> -> vector<32x128xf32>
    %c0_13 = arith.constant 0 : index
    %c0_14 = arith.constant 0 : index
    %c0_15 = arith.constant 0 : index
    %34 = vector.load %arg3[%c0_13, %c0_14, %c0_15] : memref<1x32x128xf32, #tpu.memory_space<vmem>>, vector<1x32x128xf32>
    %35 = vector.shape_cast %34 : vector<1x32x128xf32> to vector<32x128xf32>
    %36 = vector.shape_cast %33 : vector<32x128xf32> to vector<1x32x128xf32>
    tpu.vector_store %arg3[%c0_13, %c0_14, %c0_15], %36 {strides = array<i32>} : memref<1x32x128xf32, #tpu.memory_space<vmem>>, vector<1x32x128xf32>,
    %c0_16 = arith.constant 0 : index
    %c0_17 = arith.constant 0 : index
    %c0_18 = arith.constant 0 : index
    %37 = vector.load %arg4[%c0_16, %c0_17, %c0_18] : memref<1x16x32xf32, #tpu.memory_space<vmem>>, vector<1x16x32xf32>
    %38 = vector.shape_cast %37 : vector<1x16x32xf32> to vector<16x32xf32>
    %39 = vector.shape_cast %18#0 : vector<16x32xf32> to vector<1x16x32xf32>
    tpu.vector_store %arg4[%c0_16, %c0_17, %c0_18], %39 {strides = array<i32>} : memref<1x16x32xf32, #tpu.memory_space<vmem>>, vector<1x16x32xf32>,
    return
  }
  func.func @transform_0(%arg0: i32) -> (i32, i32, i32) {
    %c0_i32 = arith.constant 0 : i32
    %c0_i32_0 = arith.constant 0 : i32
    %c0_i32_1 = arith.constant 0 : i32
    return %arg0, %c0_i32, %c0_i32_0 : i32, i32, i32
  }
  func.func @transform_1(%arg0: i32) -> (i32, i32, i32) {
    %c0_i32 = arith.constant 0 : i32
    %c0_i32_0 = arith.constant 0 : i32
    %c0_i32_1 = arith.constant 0 : i32
    return %arg0, %c0_i32, %c0_i32_0 : i32, i32, i32
  }
  func.func @transform_2(%arg0: i32) -> (i32, i32, i32) {
    %c0_i32 = arith.constant 0 : i32
    %c0_i32_0 = arith.constant 0 : i32
    %c0_i32_1 = arith.constant 0 : i32
    return %arg0, %c0_i32, %c0_i32_0 : i32, i32, i32
  }
  func.func @transform_3(%arg0: i32) -> (i32, i32, i32) {
    %c0_i32 = arith.constant 0 : i32
    %c0_i32_0 = arith.constant 0 : i32
    %c0_i32_1 = arith.constant 0 : i32
    return %arg0, %c0_i32, %c0_i32_0 : i32, i32, i32
  }
}

</mosaic_0001>

<llo_original>
// kernel: matrix_decomposition_2d.1
$region0: #{matrix_decomposition_2d.1}
  #allocation0 [shape = 'u32[]', space=smem, size = 0x4, offset = 0x4, fixed_abs, tag = 'smem constant byte address 0x4 - core index']
  #allocation1 [shape = 'u32[144,128]{1,0:T(1,128)}', space=vmem, size = 0x12000, scoped, tag = 'internal scratch']
  %s0 = inlined_call_operand.vmem [shape: f32[2,32,128], index: 0, kind: input, shape index: {}]
  %s1 = inlined_call_operand.vmem [shape: f32[2,16,32], index: 1, kind: input, shape index: {}, may-alias: {1,3}]
  %s2 = inlined_call_operand.vmem [shape: f32[2,32,128], index: 2, kind: output, shape index: {0}]
  %s3 = inlined_call_operand.vmem [shape: f32[2,16,32], index: 3, kind: output, shape index: {1}, may-alias: {1,3}]
  %4 = xla_tuple %s2, %s3
  %s5 = sld [smem:[#allocation0]]
  $region56: #{matrix_decomposition_2d.1} parent=0
    _
  %s7 = ssub.s32 1, %s5
  %s8 = scalar_select 0, %s7, %s5
  loop: start=0, step=1, limit=4
  $region2: #{matrix_decomposition_2d.1} parent=0 // loop_pre_header
    _
  $region3: #{matrix_decomposition_2d.1} parent=0 // loop_header
    %s10 = sphi 0, %s14
    %p11 = scmp.ge.s32.totalorder %s10, 4
    %s20 = sphi 0, %s22
    %s23 = sphi 0, %s20
    %s24 = sphi 0, %s23
    %s40 = sphi 0, %s24
    %s46 = sphi 0, %s48
    %s49 = sphi 0, %s46
    %s50 = sphi 0, %s49
    %s66 = sphi 0, %s50
    %s72 = sphi 0, %s74
    %s75 = sphi 0, %s72
    %s76 = sphi 0, %s75
    %s92 = sphi 0, %s76
    %s98 = sphi 0, %s100
    %s101 = sphi 0, %s98
    %s102 = sphi 0, %s101
    %s118 = sphi 0, %s102
  $region4: #{matrix_decomposition_2d.1} parent=0 // loop_header_branch
    %13 = sbr.rel (%p11) target = $region8
  $region5: #{matrix_decomposition_2d.1} parent=0 // loop_body
    %s15 = ssub.s32 %s10, 1
    %s16 = ssub.s32 %s10, 2
    %s17 = sadd.s32 %s10, 1
    %s18 = ssub.s32 %s10, %s17
    %p19 = scmp.eq.s32.totalorder %s18, 0
    %s21 = sadd.s32 %s20, 1
    %s22 = scalar_select %p19, %s20, %s21
    %p25 = pneg %p19
    %p26 = scmp.eq.s32.totalorder %s10, 1
    %p27 = por %p25, %p26
    %p28 = scmp.ne.s32.totalorder %s20, %s23
    %p29 = scmp.eq.s32.totalorder %s10, 0
    %p30 = por %p28, %p29
    %p31 = scmp.ne.s32.totalorder %s20, %s23
    %p32 = scmp.eq.s32.totalorder %s15, 1
    %p33 = por %p31, %p32
    %p34 = scmp.ne.s32.totalorder %s23, %s24
    %p35 = scmp.eq.s32.totalorder %s15, 0
    %p36 = por %p34, %p35
    %p37 = scmp.ne.s32.totalorder %s23, %s24
    %p38 = scmp.eq.s32.totalorder %s16, 1
    %p39 = por %p37, %p38
    %p41 = scmp.ne.s32.totalorder %s24, %s40
    %p42 = scmp.eq.s32.totalorder %s16, 0
    %p43 = por %p41, %p42
    %s44 = ssub.s32 %s10, %s17
    %p45 = scmp.eq.s32.totalorder %s44, 0
    %s47 = sadd.s32 %s46, 1
    %s48 = scalar_select %p45, %s46, %s47
    %p51 = pneg %p45
    %p52 = scmp.eq.s32.totalorder %s10, 1
    %p53 = por %p51, %p52
    %p54 = scmp.ne.s32.totalorder %s46, %s49
    %p55 = scmp.eq.s32.totalorder %s10, 0
    %p56 = por %p54, %p55
    %p57 = scmp.ne.s32.totalorder %s46, %s49
    %p58 = scmp.eq.s32.totalorder %s15, 1
    %p59 = por %p57, %p58
    %p60 = scmp.ne.s32.totalorder %s49, %s50
    %p61 = scmp.eq.s32.totalorder %s15, 0
    %p62 = por %p60, %p61
    %p63 = scmp.ne.s32.totalorder %s49, %s50
    %p64 = scmp.eq.s32.totalorder %s16, 1
    %p65 = por %p63, %p64
    %p67 = scmp.ne.s32.totalorder %s50, %s66
    %p68 = scmp.eq.s32.totalorder %s16, 0
    %p69 = por %p67, %p68
    %s70 = ssub.s32 %s10, %s17
    %p71 = scmp.eq.s32.totalorder %s70, 0
    %s73 = sadd.s32 %s72, 1
    %s74 = scalar_select %p71, %s72, %s73
    %p77 = pneg %p71
    %p78 = scmp.eq.s32.totalorder %s10, 1
    %p79 = por %p77, %p78
    %p80 = scmp.ne.s32.totalorder %s72, %s75
    %p81 = scmp.eq.s32.totalorder %s10, 0
    %p82 = por %p80, %p81
    %p83 = scmp.ne.s32.totalorder %s72, %s75
    %p84 = scmp.eq.s32.totalorder %s15, 1
    %p85 = por %p83, %p84
    %p86 = scmp.ne.s32.totalorder %s75, %s76
    %p87 = scmp.eq.s32.totalorder %s15, 0
    %p88 = por %p86, %p87
    %p89 = scmp.ne.s32.totalorder %s75, %s76
    %p90 = scmp.eq.s32.totalorder %s16, 1
    %p91 = por %p89, %p90
    %p93 = scmp.ne.s32.totalorder %s76, %s92
    %p94 = scmp.eq.s32.totalorder %s16, 0
    %p95 = por %p93, %p94
    %s96 = ssub.s32 %s10, %s17
    %p97 = scmp.eq.s32.totalorder %s96, 0
    %s99 = sadd.s32 %s98, 1
    %s100 = scalar_select %p97, %s98, %s99
    %p103 = pneg %p97
    %p104 = scmp.eq.s32.totalorder %s10, 1
    %p105 = por %p103, %p104
    %p106 = scmp.ne.s32.totalorder %s98, %s101
    %p107 = scmp.eq.s32.totalorder %s10, 0
    %p108 = por %p106, %p107
    %p109 = scmp.ne.s32.totalorder %s98, %s101
    %p110 = scmp.eq.s32.totalorder %s15, 1
    %p111 = por %p109, %p110
    %p112 = scmp.ne.s32.totalorder %s101, %s102
    %p113 = scmp.eq.s32.totalorder %s15, 0
    %p114 = por %p112, %p113
    %p115 = scmp.ne.s32.totalorder %s101, %s102
    %p116 = scmp.eq.s32.totalorder %s16, 1
    %p117 = por %p115, %p116
    %p119 = scmp.ne.s32.totalorder %s102, %s118
    %p120 = scmp.eq.s32.totalorder %s16, 0
    %p121 = por %p119, %p120
    %p122 = scmp.le.s32.totalorder 1, %s10
    %p123 = scmp.lt.s32.totalorder %s10, 3
    %p124 = pnand %p122, %p123
    %p125 = pneg %p124
    // Predicated region
    $region9: #{matrix_decomposition_2d.1} parent=5 // pred_check
      _
    $region10: #{matrix_decomposition_2d.1} parent=5 // pred_check_branch
      %127 = sbr.rel (%p124) target = $region12
    $region11: #{matrix_decomposition_2d.1} parent=5 // pred_region
      %s128 = ssub.s32 %s10, 1
    $region12: #{matrix_decomposition_2d.1} parent=5 // pred_fallthru
      _
    %p129 = scmp.lt.s32.totalorder %s10, 2
    // Predicated region
    $region13: #{matrix_decomposition_2d.1} parent=5 // pred_check
      %p130 = pneg %p129
    $region14: #{matrix_decomposition_2d.1} parent=5 // pred_check_branch
      %132 = sbr.rel (%p130) target = $region16
    $region15: #{matrix_decomposition_2d.1} parent=5 // pred_region
      // Predicated region
      $region17: #{matrix_decomposition_2d.1} parent=15 // pred_check
        %p133 = pneg %p30
      $region18: #{matrix_decomposition_2d.1} parent=15 // pred_check_branch
        %135 = sbr.rel (%p133) target = $region20
      $region19: #{matrix_decomposition_2d.1} parent=15 // pred_region
        %p136 = scmp.lt.s32.totalorder %s10, 1
        %s137 = scalar_select %p136, %s10, 1
        %s138 = smul.addr %s137, 4
        %s139 = smul.addr %s138, 8
        %s140 = scalar_lea.vmem %s0, %s139
      $region20: #{matrix_decomposition_2d.1} parent=15 // pred_fallthru
        _
      // Predicated region
      $region21: #{matrix_decomposition_2d.1} parent=15 // pred_check
        %p141 = pneg %p56
      $region22: #{matrix_decomposition_2d.1} parent=15 // pred_check_branch
        %143 = sbr.rel (%p141) target = $region24
      $region23: #{matrix_decomposition_2d.1} parent=15 // pred_region
        %p144 = scmp.lt.s32.totalorder %s10, 1
        %s145 = scalar_select %p144, %s10, 1
        %s146 = smul.addr %s145, 2
        %s147 = smul.addr %s146, 8
        %s148 = scalar_lea.vmem %s1, %s147
      $region24: #{matrix_decomposition_2d.1} parent=15 // pred_fallthru
        _
    $region16: #{matrix_decomposition_2d.1} parent=5 // pred_fallthru
      _
    %p149 = scmp.le.s32.totalorder 1, %s10
    %p150 = scmp.lt.s32.totalorder %s10, 3
    %p151 = pnand %p149, %p150
    %p152 = pneg %p151
    // Predicated region
    $region25: #{matrix_decomposition_2d.1} parent=5 // pred_check
      _
    $region26: #{matrix_decomposition_2d.1} parent=5 // pred_check_branch
      %154 = sbr.rel (%p151) target = $region28
    $region27: #{matrix_decomposition_2d.1} parent=5 // pred_region
      %s155 = ssub.s32 %s10, 1
      %p156 = scmp.lt.s32.totalorder %s15, 1
      %s157 = scalar_select %p156, %s15, 1
      %s158 = smul.addr %s157, 4
      %s159 = smul.addr %s158, 8
      %s160 = scalar_lea.vmem %s0, %s159
      %p161 = pneg %p36
      %p162 = pneg %p33
      %p163 = scmp.lt.s32.totalorder %s15, 1
      %s164 = scalar_select %p163, %s15, 1
      %s165 = smul.addr %s164, 2
      %s166 = smul.addr %s165, 8
      %s167 = scalar_lea.vmem %s1, %s166
      %p168 = pneg %p62
      %p169 = pneg %p59
      %p170 = pneg %p88
      %p171 = pneg %p85
      %p172 = scmp.lt.s32.totalorder %s15, 1
      %s173 = scalar_select %p172, %s15, 1
      %s174 = smul.addr %s173, 4
      %s175 = smul.addr %s174, 8
      %s176 = scalar_lea.vmem %s2, %s175
      %p177 = pneg %p114
      %p178 = pneg %p111
      %p179 = scmp.lt.s32.totalorder %s15, 1
      %s180 = scalar_select %p179, %s15, 1
      %s181 = smul.addr %s180, 2
      %s182 = smul.addr %s181, 8
      %s183 = scalar_lea.vmem %s3, %s182
      %p184 = scmp.lt.s32.totalorder %s15, 1
      %s185 = scalar_select %p184, %s15, 1
      %s186 = smul.addr %s185, 4
      %s187 = smul.addr %s186, 8
      %s188 = scalar_lea.vmem %s0, %s187
      %p189 = scmp.lt.s32.totalorder %s15, 1
      %s190 = scalar_select %p189, %s15, 1
      %s191 = smul.addr %s190, 2
      %s192 = smul.addr %s191, 8
      %s193 = scalar_lea.vmem %s1, %s192
      %p194 = scmp.lt.s32.totalorder %s15, 1
      %s195 = scalar_select %p194, %s15, 1
      %s196 = smul.addr %s195, 4
      %s197 = smul.addr %s196, 8
      %s198 = scalar_lea.vmem %s2, %s197
      %p199 = scmp.lt.s32.totalorder %s15, 1
      %s200 = scalar_select %p199, %s15, 1
      %s201 = smul.addr %s200, 2
      %s202 = smul.addr %s201, 8
      %s203 = scalar_lea.vmem %s3, %s202
      %v205 = vld [vmem:[%s188] sm:$0xff]
      %v206 = vld [vmem:[%s188 + $0x8] sm:$0xff]
      %v207 = vld [vmem:[%s188 + $0x10] sm:$0xff]
      %v208 = vld [vmem:[%s188 + $0x18] sm:$0xff]
      %v209 = vpack.c.bf16 %v206, %v205
      %v210 = vpack.c.bf16 %v208, %v207
      %v211 = vld [vmem:[%s193] sm:$0xff]
      %v212 = vld [vmem:[%s193 + $0x8] sm:$0xff]
      %v213 = vmul.f32 %v211, 100.0
      %v214 = vmul.f32 %v212, 100.0
      %vm215 = vcmask 261120
      %v217 = vsel %vm215, %v213, 0
      %v220 = vsel %vm215, %v214, 0
      %222 = vmatprep.subr.mxu0 0.0
      %v223 = vand.u32 %v205, 4294901760
      %224 = vmatpush1.msra.mxu0 %v223
      %225 = vmatprep.subr.mxu0 0.0
      %v226 = vand.u32 %v206, 4294901760
      %227 = vmatpush1.msra.mxu0 %v226
      %228 = vmatprep.subr.mxu0 0.0
      %v229 = vand.u32 %v207, 4294901760
      %230 = vmatpush1.msra.mxu0 %v229
      %231 = vmatprep.subr.mxu0 0.0
      %v232 = vand.u32 %v208, 4294901760
      %233 = vmatpush1.msra.mxu0 %v232
      %234 = vmatprep.subr.mxu0 0.0
      %235 = vmatpush1.msra.mxu0 0.0
      %236 = vmatprep.subr.mxu0 0.0
      %237 = vmatpush1.msra.mxu0 0.0
      %238 = vmatprep.subr.mxu0 0.0
      %239 = vmatpush1.msra.mxu0 0.0
      %240 = vmatprep.subr.mxu0 0.0
      %241 = vmatpush1.msra.mxu0 0.0
      %242 = vmatprep.subr.mxu0 0.0
      %243 = vmatpush1.msra.mxu0 0.0
      %244 = vmatprep.subr.mxu0 0.0
      %245 = vmatpush1.msra.mxu0 0.0
      %246 = vmatprep.subr.mxu0 0.0
      %247 = vmatpush1.msra.mxu0 0.0
      %248 = vmatprep.subr.mxu0 0.0
      %249 = vmatpush1.msra.mxu0 0.0
      %250 = vmatprep.subr.mxu0 0.0
      %251 = vmatpush1.msra.mxu0 0.0
      %252 = vmatprep.subr.mxu0 0.0
      %253 = vmatpush1.msra.mxu0 0.0
      %254 = vmatprep.subr.mxu0 0.0
      %255 = vmatpush1.msra.mxu0 0.0
      %256 = vmatprep.subr.mxu0 0.0
      %257 = vmatpush1.msra.mxu0 0.0
      %258 = vmatprep.subr.mxu0 0.0
      %259 = vmatpush1.msra.mxu0 0.0
      %260 = vmatprep.subr.mxu0 0.0
      %261 = vmatpush1.msra.mxu0 0.0
      %262 = vmatprep.subr.mxu0 0.0
      %263 = vmatpush1.msra.mxu0 0.0
      %264 = vmatprep.subr.mxu0 0.0
      %265 = vmatpush1.msra.mxu0 0.0
      %266 = vmatprep.subr.mxu0 0.0
      %267 = vmatpush1.msra.mxu0 0.0
      %268 = vmatprep.subr.mxu0 0.0
      %269 = vmatpush1.msra.mxu0 0.0
      %270 = vmatprep.subr.mxu0 0.0
      %271 = vmatpush1.msra.mxu0 0.0
      %272 = vmatprep.subr.mxu0 0.0
      %273 = vmatpush1.msra.mxu0 0.0
      %274 = vmatprep.subr.mxu0 0.0
      %275 = vmatpush1.msra.mxu0 0.0
      %276 = vmatprep.subr.mxu0 0.0
      %277 = vmatpush1.msra.mxu0 0.0
      %278 = vmatprep.subr.mxu0 0.0
      %279 = vmatpush1.msra.mxu0 0.0
      %280 = vmatprep.subr.mxu0 0.0
      %281 = vmatpush1.msra.mxu0 0.0
      %282 = vmatprep.subr.mxu0 0.0
      %283 = vmatpush1.msra.mxu0 0.0
      %284 = vmatprep.subr.mxu0 0.0
      %285 = vmatpush1.msra.mxu0 0.0
      %286 = vmatprep.subr.mxu0 0.0
      %287 = vmatpush1.msra.mxu0 0.0
      %288 = vmatprep.subr.mxu0 0.0
      %289 = vmatpush1.msra.mxu0 0.0
      %290 = vmatprep.mubr.f32.mxu0 0.0
      %v291 = vand.u32 %v217, 4294901760
      %v292 = vsub.f32 %v217, %v291
      %v293 = vand.u32 %v292, 4294901760
      %v294 = vsub.f32 %v292, %v293
      %v295 = vand.u32 %v294, 4294901760
      %296 = vmatmul.mubr.f32.gmra.mrb[0].mxu0 %v295
      %v297 = vpop.f32.mrb[0].mxu0
      %v298 = vadd.f32 0.0, %v297
      %v299 = vpop.f32.mrb[0].mxu0
      %300 = vmatprep.mubr.f32.mxu0 0.0
      %v301 = vand.u32 %v220, 4294901760
      %v302 = vsub.f32 %v220, %v301
      %v303 = vand.u32 %v302, 4294901760
      %v304 = vsub.f32 %v302, %v303
      %v305 = vand.u32 %v304, 4294901760
      %306 = vmatmul.mubr.f32.gmra.mrb[0].mxu0 %v305
      %v307 = vpop.f32.mrb[0].mxu0
      %v308 = vadd.f32 0.0, %v307
      %v309 = vpop.f32.mrb[0].mxu0
      %310 = vdwg.mxu0
      %311 = vmatprep.subr.mxu0 0.0
      %v312 = vand.u32 %v205, 4294901760
      %v313 = vsub.f32 %v205, %v312
      %v314 = vand.u32 %v313, 4294901760
      %v315 = vsub.f32 %v313, %v314
      %v316 = vand.u32 %v315, 4294901760
      %317 = vmatpush1.msra.mxu0 %v316
      %318 = vmatprep.subr.mxu0 0.0
      %v319 = vand.u32 %v206, 4294901760
      %v320 = vsub.f32 %v206, %v319
      %v321 = vand.u32 %v320, 4294901760
      %v322 = vsub.f32 %v320, %v321
      %v323 = vand.u32 %v322, 4294901760
      %324 = vmatpush1.msra.mxu0 %v323
      %325 = vmatprep.subr.mxu0 0.0
      %v326 = vand.u32 %v207, 4294901760
      %v327 = vsub.f32 %v207, %v326
      %v328 = vand.u32 %v327, 4294901760
      %v329 = vsub.f32 %v327, %v328
      %v330 = vand.u32 %v329, 4294901760
      %331 = vmatpush1.msra.mxu0 %v330
      %332 = vmatprep.subr.mxu0 0.0
      %v333 = vand.u32 %v208, 4294901760
      %v334 = vsub.f32 %v208, %v333
      %v335 = vand.u32 %v334, 4294901760
      %v336 = vsub.f32 %v334, %v335
      %v337 = vand.u32 %v336, 4294901760
      %338 = vmatpush1.msra.mxu0 %v337
      %339 = vmatprep.subr.mxu0 0.0
      %340 = vmatpush1.msra.mxu0 0.0
      %341 = vmatprep.subr.mxu0 0.0
      %342 = vmatpush1.msra.mxu0 0.0
      %343 = vmatprep.subr.mxu0 0.0
      %344 = vmatpush1.msra.mxu0 0.0
      %345 = vmatprep.subr.mxu0 0.0
      %346 = vmatpush1.msra.mxu0 0.0
      %347 = vmatprep.subr.mxu0 0.0
      %348 = vmatpush1.msra.mxu0 0.0
      %349 = vmatprep.subr.mxu0 0.0
      %350 = vmatpush1.msra.mxu0 0.0
      %351 = vmatprep.subr.mxu0 0.0
      %352 = vmatpush1.msra.mxu0 0.0
      %353 = vmatprep.subr.mxu0 0.0
      %354 = vmatpush1.msra.mxu0 0.0
      %355 = vmatprep.subr.mxu0 0.0
      %356 = vmatpush1.msra.mxu0 0.0
      %357 = vmatprep.subr.mxu0 0.0
      %358 = vmatpush1.msra.mxu0 0.0
      %359 = vmatprep.subr.mxu0 0.0
      %360 = vmatpush1.msra.mxu0 0.0
      %361 = vmatprep.subr.mxu0 0.0
      %362 = vmatpush1.msra.mxu0 0.0
      %363 = vmatprep.subr.mxu0 0.0
      %364 = vmatpush1.msra.mxu0 0.0
      %365 = vmatprep.subr.mxu0 0.0
      %366 = vmatpush1.msra.mxu0 0.0
      %367 = vmatprep.subr.mxu0 0.0
      %368 = vmatpush1.msra.mxu0 0.0
      %369 = vmatprep.subr.mxu0 0.0
      %370 = vmatpush1.msra.mxu0 0.0
      %371 = vmatprep.subr.mxu0 0.0
      %372 = vmatpush1.msra.mxu0 0.0
      %373 = vmatprep.subr.mxu0 0.0
      %374 = vmatpush1.msra.mxu0 0.0
      %375 = vmatprep.subr.mxu0 0.0
      %376 = vmatpush1.msra.mxu0 0.0
      %377 = vmatprep.subr.mxu0 0.0
      %378 = vmatpush1.msra.mxu0 0.0
      %379 = vmatprep.subr.mxu0 0.0
      %380 = vmatpush1.msra.mxu0 0.0
      %381 = vmatprep.subr.mxu0 0.0
      %382 = vmatpush1.msra.mxu0 0.0
      %383 = vmatprep.subr.mxu0 0.0
      %384 = vmatpush1.msra.mxu0 0.0
      %385 = vmatprep.subr.mxu0 0.0
      %386 = vmatpush1.msra.mxu0 0.0
      %387 = vmatprep.subr.mxu0 0.0
      %388 = vmatpush1.msra.mxu0 0.0
      %389 = vmatprep.subr.mxu0 0.0
      %390 = vmatpush1.msra.mxu0 0.0
      %391 = vmatprep.subr.mxu0 0.0
      %392 = vmatpush1.msra.mxu0 0.0
      %393 = vmatprep.subr.mxu0 0.0
      %394 = vmatpush1.msra.mxu0 0.0
      %395 = vmatprep.mubr.f32.mxu0 0.0
      %v396 = vand.u32 %v217, 4294901760
      %397 = vmatmul.mubr.f32.gmra.mrb[0].mxu0 %v396
      %v398 = vpop.f32.mrb[0].mxu0
      %v399 = vadd.f32 %v298, %v398
      %v400 = vpop.f32.mrb[0].mxu0
      %401 = vmatprep.mubr.f32.mxu0 0.0
      %v402 = vand.u32 %v220, 4294901760
      %403 = vmatmul.mubr.f32.gmra.mrb[0].mxu0 %v402
      %v404 = vpop.f32.mrb[0].mxu0
      %v405 = vadd.f32 %v308, %v404
      %v406 = vpop.f32.mrb[0].mxu0
      %407 = vdwg.mxu0
      %408 = vmatprep.subr.mxu0 0.0
      %v409 = vand.u32 %v205, 4294901760
      %v410 = vsub.f32 %v205, %v409
      %411 = vmatpush1.msra.mxu0 %v410
      %412 = vmatprep.subr.mxu0 0.0
      %v413 = vand.u32 %v206, 4294901760
      %v414 = vsub.f32 %v206, %v413
      %415 = vmatpush1.msra.mxu0 %v414
      %416 = vmatprep.subr.mxu0 0.0
      %v417 = vand.u32 %v207, 4294901760
      %v418 = vsub.f32 %v207, %v417
      %419 = vmatpush1.msra.mxu0 %v418
      %420 = vmatprep.subr.mxu0 0.0
      %v421 = vand.u32 %v208, 4294901760
      %v422 = vsub.f32 %v208, %v421
      %423 = vmatpush1.msra.mxu0 %v422
      %424 = vmatprep.subr.mxu0 0.0
      %425 = vmatpush1.msra.mxu0 0.0
      %426 = vmatprep.subr.mxu0 0.0
      %427 = vmatpush1.msra.mxu0 0.0
      %428 = vmatprep.subr.mxu0 0.0
      %429 = vmatpush1.msra.mxu0 0.0
      %430 = vmatprep.subr.mxu0 0.0
      %431 = vmatpush1.msra.mxu0 0.0
      %432 = vmatprep.subr.mxu0 0.0
      %433 = vmatpush1.msra.mxu0 0.0
      %434 = vmatprep.subr.mxu0 0.0
      %435 = vmatpush1.msra.mxu0 0.0
      %436 = vmatprep.subr.mxu0 0.0
      %437 = vmatpush1.msra.mxu0 0.0
      %438 = vmatprep.subr.mxu0 0.0
      %439 = vmatpush1.msra.mxu0 0.0
      %440 = vmatprep.subr.mxu0 0.0
      %441 = vmatpush1.msra.mxu0 0.0
      %442 = vmatprep.subr.mxu0 0.0
      %443 = vmatpush1.msra.mxu0 0.0
      %444 = vmatprep.subr.mxu0 0.0
      %445 = vmatpush1.msra.mxu0 0.0
      %446 = vmatprep.subr.mxu0 0.0
      %447 = vmatpush1.msra.mxu0 0.0
      %448 = vmatprep.subr.mxu0 0.0
      %449 = vmatpush1.msra.mxu0 0.0
      %450 = vmatprep.subr.mxu0 0.0
      %451 = vmatpush1.msra.mxu0 0.0
      %452 = vmatprep.subr.mxu0 0.0
      %453 = vmatpush1.msra.mxu0 0.0
      %454 = vmatprep.subr.mxu0 0.0
      %455 = vmatpush1.msra.mxu0 0.0
      %456 = vmatprep.subr.mxu0 0.0
      %457 = vmatpush1.msra.mxu0 0.0
      %458 = vmatprep.subr.mxu0 0.0
      %459 = vmatpush1.msra.mxu0 0.0
      %460 = vmatprep.subr.mxu0 0.0
      %461 = vmatpush1.msra.mxu0 0.0
      %462 = vmatprep.subr.mxu0 0.0
      %463 = vmatpush1.msra.mxu0 0.0
      %464 = vmatprep.subr.mxu0 0.0
      %465 = vmatpush1.msra.mxu0 0.0
      %466 = vmatprep.subr.mxu0 0.0
      %467 = vmatpush1.msra.mxu0 0.0
      %468 = vmatprep.subr.mxu0 0.0
      %469 = vmatpush1.msra.mxu0 0.0
      %470 = vmatprep.subr.mxu0 0.0
      %471 = vmatpush1.msra.mxu0 0.0
      %472 = vmatprep.subr.mxu0 0.0
      %473 = vmatpush1.msra.mxu0 0.0
      %474 = vmatprep.subr.mxu0 0.0
      %475 = vmatpush1.msra.mxu0 0.0
      %476 = vmatprep.subr.mxu0 0.0
      %477 = vmatpush1.msra.mxu0 0.0
      %478 = vmatprep.subr.mxu0 0.0
      %479 = vmatpush1.msra.mxu0 0.0
      %480 = vmatprep.mubr.f32.mxu0 0.0
      %v481 = vand.u32 %v217, 4294901760
      %v482 = vsub.f32 %v217, %v481
      %483 = vmatmul.mubr.f32.gmra.mrb[0].mxu0 %v482
      %v484 = vpop.f32.mrb[0].mxu0
      %v485 = vadd.f32 %v399, %v484
      %v486 = vpop.f32.mrb[0].mxu0
      %487 = vmatprep.mubr.f32.mxu0 0.0
      %v488 = vand.u32 %v220, 4294901760
      %v489 = vsub.f32 %v220, %v488
      %490 = vmatmul.mubr.f32.gmra.mrb[0].mxu0 %v489
      %v491 = vpop.f32.mrb[0].mxu0
      %v492 = vadd.f32 %v405, %v491
      %v493 = vpop.f32.mrb[0].mxu0
      %494 = vdwg.mxu0
      %495 = vmatprep.subr.mxu0 0.0
      %v496 = vand.u32 %v205, 4294901760
      %497 = vmatpush1.msra.mxu0 %v496
      %498 = vmatprep.subr.mxu0 0.0
      %v499 = vand.u32 %v206, 4294901760
      %500 = vmatpush1.msra.mxu0 %v499
      %501 = vmatprep.subr.mxu0 0.0
      %v502 = vand.u32 %v207, 4294901760
      %503 = vmatpush1.msra.mxu0 %v502
      %504 = vmatprep.subr.mxu0 0.0
      %v505 = vand.u32 %v208, 4294901760
      %506 = vmatpush1.msra.mxu0 %v505
      %507 = vmatprep.subr.mxu0 0.0
      %508 = vmatpush1.msra.mxu0 0.0
      %509 = vmatprep.subr.mxu0 0.0
      %510 = vmatpush1.msra.mxu0 0.0
      %511 = vmatprep.subr.mxu0 0.0
      %512 = vmatpush1.msra.mxu0 0.0
      %513 = vmatprep.subr.mxu0 0.0
      %514 = vmatpush1.msra.mxu0 0.0
      %515 = vmatprep.subr.mxu0 0.0
      %516 = vmatpush1.msra.mxu0 0.0
      %517 = vmatprep.subr.mxu0 0.0
      %518 = vmatpush1.msra.mxu0 0.0
      %519 = vmatprep.subr.mxu0 0.0
      %520 = vmatpush1.msra.mxu0 0.0
      %521 = vmatprep.subr.mxu0 0.0
      %522 = vmatpush1.msra.mxu0 0.0
      %523 = vmatprep.subr.mxu0 0.0
      %524 = vmatpush1.msra.mxu0 0.0
      %525 = vmatprep.subr.mxu0 0.0
      %526 = vmatpush1.msra.mxu0 0.0
      %527 = vmatprep.subr.mxu0 0.0
      %528 = vmatpush1.msra.mxu0 0.0
      %529 = vmatprep.subr.mxu0 0.0
      %530 = vmatpush1.msra.mxu0 0.0
      %531 = vmatprep.subr.mxu0 0.0
      %532 = vmatpush1.msra.mxu0 0.0
      %533 = vmatprep.subr.mxu0 0.0
      %534 = vmatpush1.msra.mxu0 0.0
      %535 = vmatprep.subr.mxu0 0.0
      %536 = vmatpush1.msra.mxu0 0.0
      %537 = vmatprep.subr.mxu0 0.0
      %538 = vmatpush1.msra.mxu0 0.0
      %539 = vmatprep.subr.mxu0 0.0
      %540 = vmatpush1.msra.mxu0 0.0
      %541 = vmatprep.subr.mxu0 0.0
      %542 = vmatpush1.msra.mxu0 0.0
      %543 = vmatprep.subr.mxu0 0.0
      %544 = vmatpush1.msra.mxu0 0.0
      %545 = vmatprep.subr.mxu0 0.0
      %546 = vmatpush1.msra.mxu0 0.0
      %547 = vmatprep.subr.mxu0 0.0
      %548 = vmatpush1.msra.mxu0 0.0
      %549 = vmatprep.subr.mxu0 0.0
      %550 = vmatpush1.msra.mxu0 0.0
      %551 = vmatprep.subr.mxu0 0.0
      %552 = vmatpush1.msra.mxu0 0.0
      %553 = vmatprep.subr.mxu0 0.0
      %554 = vmatpush1.msra.mxu0 0.0
      %555 = vmatprep.subr.mxu0 0.0
      %556 = vmatpush1.msra.mxu0 0.0
      %557 = vmatprep.subr.mxu0 0.0
      %558 = vmatpush1.msra.mxu0 0.0
      %559 = vmatprep.subr.mxu0 0.0
      %560 = vmatpush1.msra.mxu0 0.0
      %561 = vmatprep.subr.mxu0 0.0
      %562 = vmatpush1.msra.mxu0 0.0
      %563 = vmatprep.mubr.f32.mxu0 0.0
      %v564 = vand.u32 %v217, 4294901760
      %v565 = vsub.f32 %v217, %v564
      %v566 = vand.u32 %v565, 4294901760
      %567 = vmatmul.mubr.f32.gmra.mrb[0].mxu0 %v566
      %v568 = vpop.f32.mrb[0].mxu0
      %v569 = vadd.f32 %v485, %v568
      %v570 = vpop.f32.mrb[0].mxu0
      %571 = vmatprep.mubr.f32.mxu0 0.0
      %v572 = vand.u32 %v220, 4294901760
      %v573 = vsub.f32 %v220, %v572
      %v574 = vand.u32 %v573, 4294901760
      %575 = vmatmul.mubr.f32.gmra.mrb[0].mxu0 %v574
      %v576 = vpop.f32.mrb[0].mxu0
      %v577 = vadd.f32 %v492, %v576
      %v578 = vpop.f32.mrb[0].mxu0
      %579 = vdwg.mxu0
      %580 = vmatprep.subr.mxu0 0.0
      %v581 = vand.u32 %v205, 4294901760
      %v582 = vsub.f32 %v205, %v581
      %v583 = vand.u32 %v582, 4294901760
      %584 = vmatpush1.msra.mxu0 %v583
      %585 = vmatprep.subr.mxu0 0.0
      %v586 = vand.u32 %v206, 4294901760
      %v587 = vsub.f32 %v206, %v586
      %v588 = vand.u32 %v587, 4294901760
      %589 = vmatpush1.msra.mxu0 %v588
      %590 = vmatprep.subr.mxu0 0.0
      %v591 = vand.u32 %v207, 4294901760
      %v592 = vsub.f32 %v207, %v591
      %v593 = vand.u32 %v592, 4294901760
      %594 = vmatpush1.msra.mxu0 %v593
      %595 = vmatprep.subr.mxu0 0.0
      %v596 = vand.u32 %v208, 4294901760
      %v597 = vsub.f32 %v208, %v596
      %v598 = vand.u32 %v597, 4294901760
      %599 = vmatpush1.msra.mxu0 %v598
      %600 = vmatprep.subr.mxu0 0.0
      %601 = vmatpush1.msra.mxu0 0.0
      %602 = vmatprep.subr.mxu0 0.0
      %603 = vmatpush1.msra.mxu0 0.0
      %604 = vmatprep.subr.mxu0 0.0
      %605 = vmatpush1.msra.mxu0 0.0
      %606 = vmatprep.subr.mxu0 0.0
      %607 = vmatpush1.msra.mxu0 0.0
      %608 = vmatprep.subr.mxu0 0.0
      %609 = vmatpush1.msra.mxu0 0.0
      %610 = vmatprep.subr.mxu0 0.0
      %611 = vmatpush1.msra.mxu0 0.0
      %612 = vmatprep.subr.mxu0 0.0
      %613 = vmatpush1.msra.mxu0 0.0
      %614 = vmatprep.subr.mxu0 0.0
      %615 = vmatpush1.msra.mxu0 0.0
      %616 = vmatprep.subr.mxu0 0.0
      %617 = vmatpush1.msra.mxu0 0.0
      %618 = vmatprep.subr.mxu0 0.0
      %619 = vmatpush1.msra.mxu0 0.0
      %620 = vmatprep.subr.mxu0 0.0
      %621 = vmatpush1.msra.mxu0 0.0
      %622 = vmatprep.subr.mxu0 0.0
      %623 = vmatpush1.msra.mxu0 0.0
      %624 = vmatprep.subr.mxu0 0.0
      %625 = vmatpush1.msra.mxu0 0.0
      %626 = vmatprep.subr.mxu0 0.0
      %627 = vmatpush1.msra.mxu0 0.0
      %628 = vmatprep.subr.mxu0 0.0
      %629 = vmatpush1.msra.mxu0 0.0
      %630 = vmatprep.subr.mxu0 0.0
      %631 = vmatpush1.msra.mxu0 0.0
      %632 = vmatprep.subr.mxu0 0.0
      %633 = vmatpush1.msra.mxu0 0.0
      %634 = vmatprep.subr.mxu0 0.0
      %635 = vmatpush1.msra.mxu0 0.0
      %636 = vmatprep.subr.mxu0 0.0
      %637 = vmatpush1.msra.mxu0 0.0
      %638 = vmatprep.subr.mxu0 0.0
      %639 = vmatpush1.msra.mxu0 0.0
      %640 = vmatprep.subr.mxu0 0.0
      %641 = vmatpush1.msra.mxu0 0.0
      %642 = vmatprep.subr.mxu0 0.0
      %643 = vmatpush1.msra.mxu0 0.0
      %644 = vmatprep.subr.mxu0 0.0
      %645 = vmatpush1.msra.mxu0 0.0
      %646 = vmatprep.subr.mxu0 0.0
      %647 = vmatpush1.msra.mxu0 0.0
      %648 = vmatprep.subr.mxu0 0.0
      %649 = vmatpush1.msra.mxu0 0.0
      %650 = vmatprep.subr.mxu0 0.0
      %651 = vmatpush1.msra.mxu0 0.0
      %652 = vmatprep.subr.mxu0 0.0
      %653 = vmatpush1.msra.mxu0 0.0
      %654 = vmatprep.subr.mxu0 0.0
      %655 = vmatpush1.msra.mxu0 0.0
      %656 = vmatprep.mubr.f32.mxu0 0.0
      %v657 = vand.u32 %v217, 4294901760
      %658 = vmatmul.mubr.f32.gmra.mrb[0].mxu0 %v657
      %v659 = vpop.f32.mrb[0].mxu0
      %v660 = vadd.f32 %v569, %v659
      %v661 = vpop.f32.mrb[0].mxu0
      %662 = vmatprep.mubr.f32.mxu0 0.0
      %v663 = vand.u32 %v220, 4294901760
      %664 = vmatmul.mubr.f32.gmra.mrb[0].mxu0 %v663
      %v665 = vpop.f32.mrb[0].mxu0
      %v666 = vadd.f32 %v577, %v665
      %v667 = vpop.f32.mrb[0].mxu0
      %668 = vdwg.mxu0
      %669 = vmatprep.subr.mxu0 0.0
      %v670 = vand.u32 %v205, 4294901760
      %671 = vmatpush1.msra.mxu0 %v670
      %672 = vmatprep.subr.mxu0 0.0
      %v673 = vand.u32 %v206, 4294901760
      %674 = vmatpush1.msra.mxu0 %v673
      %675 = vmatprep.subr.mxu0 0.0
      %v676 = vand.u32 %v207, 4294901760
      %677 = vmatpush1.msra.mxu0 %v676
      %678 = vmatprep.subr.mxu0 0.0
      %v679 = vand.u32 %v208, 4294901760
      %680 = vmatpush1.msra.mxu0 %v679
      %681 = vmatprep.subr.mxu0 0.0
      %682 = vmatpush1.msra.mxu0 0.0
      %683 = vmatprep.subr.mxu0 0.0
      %684 = vmatpush1.msra.mxu0 0.0
      %685 = vmatprep.subr.mxu0 0.0
      %686 = vmatpush1.msra.mxu0 0.0
      %687 = vmatprep.subr.mxu0 0.0
      %688 = vmatpush1.msra.mxu0 0.0
      %689 = vmatprep.subr.mxu0 0.0
      %690 = vmatpush1.msra.mxu0 0.0
      %691 = vmatprep.subr.mxu0 0.0
      %692 = vmatpush1.msra.mxu0 0.0
      %693 = vmatprep.subr.mxu0 0.0
      %694 = vmatpush1.msra.mxu0 0.0
      %695 = vmatprep.subr.mxu0 0.0
      %696 = vmatpush1.msra.mxu0 0.0
      %697 = vmatprep.subr.mxu0 0.0
      %698 = vmatpush1.msra.mxu0 0.0
      %699 = vmatprep.subr.mxu0 0.0
      %700 = vmatpush1.msra.mxu0 0.0
      %701 = vmatprep.subr.mxu0 0.0
      %702 = vmatpush1.msra.mxu0 0.0
      %703 = vmatprep.subr.mxu0 0.0
      %704 = vmatpush1.msra.mxu0 0.0
      %705 = vmatprep.subr.mxu0 0.0
      %706 = vmatpush1.msra.mxu0 0.0
      %707 = vmatprep.subr.mxu0 0.0
      %708 = vmatpush1.msra.mxu0 0.0
      %709 = vmatprep.subr.mxu0 0.0
      %710 = vmatpush1.msra.mxu0 0.0
      %711 = vmatprep.subr.mxu0 0.0
      %712 = vmatpush1.msra.mxu0 0.0
      %713 = vmatprep.subr.mxu0 0.0
      %714 = vmatpush1.msra.mxu0 0.0
      %715 = vmatprep.subr.mxu0 0.0
      %716 = vmatpush1.msra.mxu0 0.0
      %717 = vmatprep.subr.mxu0 0.0
      %718 = vmatpush1.msra.mxu0 0.0
      %719 = vmatprep.subr.mxu0 0.0
      %720 = vmatpush1.msra.mxu0 0.0
      %721 = vmatprep.subr.mxu0 0.0
      %722 = vmatpush1.msra.mxu0 0.0
      %723 = vmatprep.subr.mxu0 0.0
      %724 = vmatpush1.msra.mxu0 0.0
      %725 = vmatprep.subr.mxu0 0.0
      %726 = vmatpush1.msra.mxu0 0.0
      %727 = vmatprep.subr.mxu0 0.0
      %728 = vmatpush1.msra.mxu0 0.0
      %729 = vmatprep.subr.mxu0 0.0
      %730 = vmatpush1.msra.mxu0 0.0
      %731 = vmatprep.subr.mxu0 0.0
      %732 = vmatpush1.msra.mxu0 0.0
      %733 = vmatprep.subr.mxu0 0.0
      %734 = vmatpush1.msra.mxu0 0.0
      %735 = vmatprep.subr.mxu0 0.0
      %736 = vmatpush1.msra.mxu0 0.0
      %737 = vmatprep.mubr.f32.mxu0 0.0
      %v738 = vand.u32 %v217, 4294901760
      %739 = vmatmul.mubr.f32.gmra.mrb[0].mxu0 %v738
      %v740 = vpop.f32.mrb[0].mxu0
      %v741 = vadd.f32 %v660, %v740
      %v742 = vpop.f32.mrb[0].mxu0
      %743 = vmatprep.mubr.f32.mxu0 0.0
      %v744 = vand.u32 %v220, 4294901760
      %745 = vmatmul.mubr.f32.gmra.mrb[0].mxu0 %v744
      %v746 = vpop.f32.mrb[0].mxu0
      %v747 = vadd.f32 %v666, %v746
      %v748 = vpop.f32.mrb[0].mxu0
      %749 = vdwg.mxu0
      %v750 = vmax.f32 %v741, %v747
      %v751 = vrot.slane %v750, 4
      %v752 = vmax.f32 %v750, %v751
      %v753 = vrot.slane %v752, 2
      %v754 = vmax.f32 %v752, %v753
      %v755 = vrot.slane %v754, 1
      %v756 = vmax.f32 %v754, %v755
      %v757 = vsub.f32 %v741, %v756
      %v758 = vsub.f32 %v747, %v756
      %v759 = vmul.f32 %v757, 1.442695
      %v760 = vpow.pop %v759
      %v761 = vmul.f32 %v758, 1.442695
      %v762 = vpow.pop %v761
      %v763 = vadd.f32 %v760, %v762
      %v764 = vrot.slane %v763, 4
      %v765 = vadd.f32 %v763, %v764
      %v766 = vrot.slane %v765, 2
      %v767 = vadd.f32 %v765, %v766
      %v768 = vrot.slane %v767, 1
      %v769 = vadd.f32 %v767, %v768
      %v770 = vrcp.pop %v769
      %v771 = vmul.f32 %v760, %v770
      %v772 = vmul.f32 %v762, %v770
      loop: start=0, step=1, limit=7
      $region29: #{matrix_decomposition_2d.1} parent=27 // loop_pre_header
        _
      $region30: #{matrix_decomposition_2d.1} parent=27 // loop_header
        %s774 = sphi 0, %s778
        %p775 = scmp.ge.s32.totalorder %s774, 7
        %v779 = vphi %v211, %v1054
        %v780 = vphi %v212, %v1055
        %v781 = vphi %v771, %v920
        %v782 = vphi %v772, %v921
      $region31: #{matrix_decomposition_2d.1} parent=27 // loop_header_branch
        %777 = sbr.rel (%p775) target = $region35
      $region32: #{matrix_decomposition_2d.1} parent=27 // loop_body
        %v783 = vpack.c.bf16 %v780, %v779
        %v785 = vsel %vm215, %v783, 0
        %787 = vmatprep.subr.bf16.mxu0 0
        %788 = vmatpush1.bf16.msra.mxu0 %v209
        %789 = vmatprep.subr.bf16.mxu0 0
        %790 = vmatpush1.bf16.msra.mxu0 %v210
        %791 = vmatprep.subr.bf16.mxu0 0
        %792 = vmatpush1.bf16.msra.mxu0 0
        %793 = vmatprep.subr.bf16.mxu0 0
        %794 = vmatpush1.bf16.msra.mxu0 0
        %795 = vmatprep.subr.bf16.mxu0 0
        %796 = vmatpush1.bf16.msra.mxu0 0
        %797 = vmatprep.subr.bf16.mxu0 0
        %798 = vmatpush1.bf16.msra.mxu0 0
        %799 = vmatprep.subr.bf16.mxu0 0
        %800 = vmatpush1.bf16.msra.mxu0 0
        %801 = vmatprep.subr.bf16.mxu0 0
        %802 = vmatpush1.bf16.msra.mxu0 0
        %803 = vmatprep.subr.bf16.mxu0 0
        %804 = vmatpush1.bf16.msra.mxu0 0
        %805 = vmatprep.subr.bf16.mxu0 0
        %806 = vmatpush1.bf16.msra.mxu0 0
        %807 = vmatprep.subr.bf16.mxu0 0
        %808 = vmatpush1.bf16.msra.mxu0 0
        %809 = vmatprep.subr.bf16.mxu0 0
        %810 = vmatpush1.bf16.msra.mxu0 0
        %811 = vmatprep.subr.bf16.mxu0 0
        %812 = vmatpush1.bf16.msra.mxu0 0
        %813 = vmatprep.subr.bf16.mxu0 0
        %814 = vmatpush1.bf16.msra.mxu0 0
        %815 = vmatprep.subr.bf16.mxu0 0
        %816 = vmatpush1.bf16.msra.mxu0 0
        %817 = vmatprep.subr.bf16.mxu0 0
        %818 = vmatpush1.bf16.msra.mxu0 0
        %819 = vmatprep.mubr.bf16.mxu0 0
        %820 = vmatmul.mubr.bf16.gmra.mrb[0].mxu0 %v785
        %v821 = vpop.f32.mrb[0].mxu0
        %v822 = vadd.f32 0.0, %v821
        %v823 = vpop.f32.mrb[0].mxu0
        %v824 = vpop.f32.mrb[0].mxu0
        %v825 = vadd.f32 0.0, %v824
        %v826 = vpop.f32.mrb[0].mxu0
        %827 = vdwg.mxu0
        %828 = vmatprep.subr.bf16.mxu0 0
        %829 = vmatpush1.bf16.xpose.msra.mxu0 %v785
        %830 = vmatprep.subr.bf16.mxu0 0
        %831 = vmatpush1.bf16.xpose.msra.mxu0 0
        %832 = vmatprep.subr.bf16.mxu0 0
        %833 = vmatpush1.bf16.xpose.msra.mxu0 0
        %834 = vmatprep.subr.bf16.mxu0 0
        %835 = vmatpush1.bf16.xpose.msra.mxu0 0
        %836 = vmatprep.subr.bf16.mxu0 0
        %837 = vmatpush1.bf16.xpose.msra.mxu0 0
        %838 = vmatprep.subr.bf16.mxu0 0
        %839 = vmatpush1.bf16.xpose.msra.mxu0 0
        %840 = vmatprep.subr.bf16.mxu0 0
        %841 = vmatpush1.bf16.xpose.msra.mxu0 0
        %842 = vmatprep.subr.bf16.mxu0 0
        %843 = vmatpush1.bf16.xpose.msra.mxu0 0
        %844 = vmatprep.subr.bf16.mxu0 0
        %845 = vmatpush1.bf16.xpose.msra.mxu0 0
        %846 = vmatprep.subr.bf16.mxu0 0
        %847 = vmatpush1.bf16.xpose.msra.mxu0 0
        %848 = vmatprep.subr.bf16.mxu0 0
        %849 = vmatpush1.bf16.xpose.msra.mxu0 0
        %850 = vmatprep.subr.bf16.mxu0 0
        %851 = vmatpush1.bf16.xpose.msra.mxu0 0
        %852 = vmatprep.subr.bf16.mxu0 0
        %853 = vmatpush1.bf16.xpose.msra.mxu0 0
        %854 = vmatprep.subr.bf16.mxu0 0
        %855 = vmatpush1.bf16.xpose.msra.mxu0 0
        %856 = vmatprep.subr.bf16.mxu0 0
        %857 = vmatpush1.bf16.xpose.msra.mxu0 0
        %858 = vmatprep.subr.bf16.mxu0 0
        %859 = vmatpush1.bf16.xpose.msra.mxu0 0
        %860 = vmatprep.mubr.bf16.mxu0 0
        %861 = vmatmul.mubr.bf16.gmra.mrb[0].mxu0 %v785
        %v862 = vpop.f32.mrb[0].mxu0
        %v863 = vadd.f32 0.0, %v862
        %v864 = vpop.f32.mrb[0].mxu0
        %v865 = vpop.f32.mrb[0].mxu0
        %v866 = vadd.f32 0.0, %v865
        %v867 = vpop.f32.mrb[0].mxu0
        %868 = vdwg.mxu0
        %v869 = vpack.c.bf16 %v866, %v863
        %v870 = vpack.c.bf16 %v782, %v781
        %v871 = vmul.f32 %v781, %v822
        %v872 = vmul.f32 %v782, %v825
        %vm873 = vcmask 130048
        %v875 = vsel %vm873, %v869, 0
        %877 = vmatprep.subr.bf16.mxu0 0
        %878 = vmatpush1.bf16.msra.mxu0 %v870
        %879 = vmatprep.subr.bf16.mxu0 0
        %880 = vmatpush1.bf16.msra.mxu0 0
        %881 = vmatprep.subr.bf16.mxu0 0
        %882 = vmatpush1.bf16.msra.mxu0 0
        %883 = vmatprep.subr.bf16.mxu0 0
        %884 = vmatpush1.bf16.msra.mxu0 0
        %885 = vmatprep.subr.bf16.mxu0 0
        %886 = vmatpush1.bf16.msra.mxu0 0
        %887 = vmatprep.subr.bf16.mxu0 0
        %888 = vmatpush1.bf16.msra.mxu0 0
        %889 = vmatprep.subr.bf16.mxu0 0
        %890 = vmatpush1.bf16.msra.mxu0 0
        %891 = vmatprep.subr.bf16.mxu0 0
        %892 = vmatpush1.bf16.msra.mxu0 0
        %893 = vmatprep.subr.bf16.mxu0 0
        %894 = vmatpush1.bf16.msra.mxu0 0
        %895 = vmatprep.subr.bf16.mxu0 0
        %896 = vmatpush1.bf16.msra.mxu0 0
        %897 = vmatprep.subr.bf16.mxu0 0
        %898 = vmatpush1.bf16.msra.mxu0 0
        %899 = vmatprep.subr.bf16.mxu0 0
        %900 = vmatpush1.bf16.msra.mxu0 0
        %901 = vmatprep.subr.bf16.mxu0 0
        %902 = vmatpush1.bf16.msra.mxu0 0
        %903 = vmatprep.subr.bf16.mxu0 0
        %904 = vmatpush1.bf16.msra.mxu0 0
        %905 = vmatprep.subr.bf16.mxu0 0
        %906 = vmatpush1.bf16.msra.mxu0 0
        %907 = vmatprep.subr.bf16.mxu0 0
        %908 = vmatpush1.bf16.msra.mxu0 0
        %909 = vmatprep.mubr.bf16.mxu0 0
        %910 = vmatmul.mubr.bf16.gmra.mrb[0].mxu0 %v875
        %v911 = vpop.f32.mrb[0].mxu0
        %v912 = vadd.f32 1e-06, %v911
        %v913 = vpop.f32.mrb[0].mxu0
        %v914 = vpop.f32.mrb[0].mxu0
        %v915 = vadd.f32 1e-06, %v914
        %v916 = vpop.f32.mrb[0].mxu0
        %917 = vdwg.mxu0
        %v918 = vrcp.pop %v912
        %v919 = vrcp.pop %v915
        %v920 = vmul.f32 %v871, %v918
        %v921 = vmul.f32 %v872, %v919
        %v922 = vpack.c.bf16 %v921, %v920
        %923 = vmatprep.subr.bf16.mxu0 0
        %924 = vmatpush1.bf16.xpose.msra.mxu0 %v209
        %925 = vmatprep.subr.bf16.mxu0 0
        %926 = vmatpush1.bf16.xpose.msra.mxu0 %v210
        %927 = vmatprep.subr.bf16.mxu0 0
        %928 = vmatpush1.bf16.xpose.msra.mxu0 0
        %929 = vmatprep.subr.bf16.mxu0 0
        %930 = vmatpush1.bf16.xpose.msra.mxu0 0
        %931 = vmatprep.subr.bf16.mxu0 0
        %932 = vmatpush1.bf16.xpose.msra.mxu0 0
        %933 = vmatprep.subr.bf16.mxu0 0
        %934 = vmatpush1.bf16.xpose.msra.mxu0 0
        %935 = vmatprep.subr.bf16.mxu0 0
        %936 = vmatpush1.bf16.xpose.msra.mxu0 0
        %937 = vmatprep.subr.bf16.mxu0 0
        %938 = vmatpush1.bf16.xpose.msra.mxu0 0
        %939 = vmatprep.subr.bf16.mxu0 0
        %940 = vmatpush1.bf16.xpose.msra.mxu0 0
        %941 = vmatprep.subr.bf16.mxu0 0
        %942 = vmatpush1.bf16.xpose.msra.mxu0 0
        %943 = vmatprep.subr.bf16.mxu0 0
        %944 = vmatpush1.bf16.xpose.msra.mxu0 0
        %945 = vmatprep.subr.bf16.mxu0 0
        %946 = vmatpush1.bf16.xpose.msra.mxu0 0
        %947 = vmatprep.subr.bf16.mxu0 0
        %948 = vmatpush1.bf16.xpose.msra.mxu0 0
        %949 = vmatprep.subr.bf16.mxu0 0
        %950 = vmatpush1.bf16.xpose.msra.mxu0 0
        %951 = vmatprep.subr.bf16.mxu0 0
        %952 = vmatpush1.bf16.xpose.msra.mxu0 0
        %953 = vmatprep.subr.bf16.mxu0 0
        %954 = vmatpush1.bf16.xpose.msra.mxu0 0
        %955 = vmatprep.mubr.bf16.mxu0 0
        %956 = vmatmul.mubr.bf16.gmra.mrb[0].mxu0 %v922
        %v957 = vpop.f32.mrb[0].mxu0
        %v958 = vadd.f32 0.0, %v957
        %v959 = vpop.f32.mrb[0].mxu0
        %v960 = vpop.f32.mrb[0].mxu0
        %v961 = vadd.f32 0.0, %v960
        %v962 = vpop.f32.mrb[0].mxu0
        %963 = vdwg.mxu0
        %964 = vmatprep.subr.bf16.mxu0 0
        %965 = vmatpush1.bf16.xpose.msra.mxu0 %v922
        %966 = vmatprep.subr.bf16.mxu0 0
        %967 = vmatpush1.bf16.xpose.msra.mxu0 0
        %968 = vmatprep.subr.bf16.mxu0 0
        %969 = vmatpush1.bf16.xpose.msra.mxu0 0
        %970 = vmatprep.subr.bf16.mxu0 0
        %971 = vmatpush1.bf16.xpose.msra.mxu0 0
        %972 = vmatprep.subr.bf16.mxu0 0
        %973 = vmatpush1.bf16.xpose.msra.mxu0 0
        %974 = vmatprep.subr.bf16.mxu0 0
        %975 = vmatpush1.bf16.xpose.msra.mxu0 0
        %976 = vmatprep.subr.bf16.mxu0 0
        %977 = vmatpush1.bf16.xpose.msra.mxu0 0
        %978 = vmatprep.subr.bf16.mxu0 0
        %979 = vmatpush1.bf16.xpose.msra.mxu0 0
        %980 = vmatprep.subr.bf16.mxu0 0
        %981 = vmatpush1.bf16.xpose.msra.mxu0 0
        %982 = vmatprep.subr.bf16.mxu0 0
        %983 = vmatpush1.bf16.xpose.msra.mxu0 0
        %984 = vmatprep.subr.bf16.mxu0 0
        %985 = vmatpush1.bf16.xpose.msra.mxu0 0
        %986 = vmatprep.subr.bf16.mxu0 0
        %987 = vmatpush1.bf16.xpose.msra.mxu0 0
        %988 = vmatprep.subr.bf16.mxu0 0
        %989 = vmatpush1.bf16.xpose.msra.mxu0 0
        %990 = vmatprep.subr.bf16.mxu0 0
        %991 = vmatpush1.bf16.xpose.msra.mxu0 0
        %992 = vmatprep.subr.bf16.mxu0 0
        %993 = vmatpush1.bf16.xpose.msra.mxu0 0
        %994 = vmatprep.subr.bf16.mxu0 0
        %995 = vmatpush1.bf16.xpose.msra.mxu0 0
        %996 = vmatprep.mubr.bf16.mxu0 0
        %997 = vmatmul.mubr.bf16.gmra.mrb[0].mxu0 %v922
        %v998 = vpop.f32.mrb[0].mxu0
        %v999 = vadd.f32 0.0, %v998
        %v1000 = vpop.f32.mrb[0].mxu0
        %v1001 = vpop.f32.mrb[0].mxu0
        %v1002 = vadd.f32 0.0, %v1001
        %v1003 = vpop.f32.mrb[0].mxu0
        %1004 = vdwg.mxu0
        %v1005 = vpack.c.bf16 %v1002, %v999
        %v1006 = vmul.f32 %v779, %v958
        %v1007 = vmul.f32 %v780, %v961
        %v1009 = vsel %vm873, %v1005, 0
        %1011 = vmatprep.subr.bf16.mxu0 0
        %1012 = vmatpush1.bf16.msra.mxu0 %v783
        %1013 = vmatprep.subr.bf16.mxu0 0
        %1014 = vmatpush1.bf16.msra.mxu0 0
        %1015 = vmatprep.subr.bf16.mxu0 0
        %1016 = vmatpush1.bf16.msra.mxu0 0
        %1017 = vmatprep.subr.bf16.mxu0 0
        %1018 = vmatpush1.bf16.msra.mxu0 0
        %1019 = vmatprep.subr.bf16.mxu0 0
        %1020 = vmatpush1.bf16.msra.mxu0 0
        %1021 = vmatprep.subr.bf16.mxu0 0
        %1022 = vmatpush1.bf16.msra.mxu0 0
        %1023 = vmatprep.subr.bf16.mxu0 0
        %1024 = vmatpush1.bf16.msra.mxu0 0
        %1025 = vmatprep.subr.bf16.mxu0 0
        %1026 = vmatpush1.bf16.msra.mxu0 0
        %1027 = vmatprep.subr.bf16.mxu0 0
        %1028 = vmatpush1.bf16.msra.mxu0 0
        %1029 = vmatprep.subr.bf16.mxu0 0
        %1030 = vmatpush1.bf16.msra.mxu0 0
        %1031 = vmatprep.subr.bf16.mxu0 0
        %1032 = vmatpush1.bf16.msra.mxu0 0
        %1033 = vmatprep.subr.bf16.mxu0 0
        %1034 = vmatpush1.bf16.msra.mxu0 0
        %1035 = vmatprep.subr.bf16.mxu0 0
        %1036 = vmatpush1.bf16.msra.mxu0 0
        %1037 = vmatprep.subr.bf16.mxu0 0
        %1038 = vmatpush1.bf16.msra.mxu0 0
        %1039 = vmatprep.subr.bf16.mxu0 0
        %1040 = vmatpush1.bf16.msra.mxu0 0
        %1041 = vmatprep.subr.bf16.mxu0 0
        %1042 = vmatpush1.bf16.msra.mxu0 0
        %1043 = vmatprep.mubr.bf16.mxu0 0
        %1044 = vmatmul.mubr.bf16.gmra.mrb[0].mxu0 %v1009
        %v1045 = vpop.f32.mrb[0].mxu0
        %v1046 = vadd.f32 1e-06, %v1045
        %v1047 = vpop.f32.mrb[0].mxu0
        %v1048 = vpop.f32.mrb[0].mxu0
        %v1049 = vadd.f32 1e-06, %v1048
        %v1050 = vpop.f32.mrb[0].mxu0
        %1051 = vdwg.mxu0
        %v1052 = vrcp.pop %v1046
        %v1053 = vrcp.pop %v1049
        %v1054 = vmul.f32 %v1006, %v1052
        %v1055 = vmul.f32 %v1007, %v1053
      $region33: #{matrix_decomposition_2d.1} parent=27 // loop_footer
        %s778 = sadd.s32 1, %s774
      $region34: #{matrix_decomposition_2d.1} parent=27 // loop_footer_branch
        %773 = sbr.rel target = $region30
      $region35: #{matrix_decomposition_2d.1} parent=27 // loop_exit
        _
      %v1056 = vpack.c.bf16 %v780, %v779
      %v1058 = vsel %vm215, %v1056, 0
      %1060 = vmatprep.subr.bf16.mxu0 0
      %1061 = vmatpush1.bf16.msra.mxu0 %v209
      %1062 = vmatprep.subr.bf16.mxu0 0
      %1063 = vmatpush1.bf16.msra.mxu0 %v210
      %1064 = vmatprep.subr.bf16.mxu0 0
      %1065 = vmatpush1.bf16.msra.mxu0 0
      %1066 = vmatprep.subr.bf16.mxu0 0
      %1067 = vmatpush1.bf16.msra.mxu0 0
      %1068 = vmatprep.subr.bf16.mxu0 0
      %1069 = vmatpush1.bf16.msra.mxu0 0
      %1070 = vmatprep.subr.bf16.mxu0 0
      %1071 = vmatpush1.bf16.msra.mxu0 0
      %1072 = vmatprep.subr.bf16.mxu0 0
      %1073 = vmatpush1.bf16.msra.mxu0 0
      %1074 = vmatprep.subr.bf16.mxu0 0
      %1075 = vmatpush1.bf16.msra.mxu0 0
      %1076 = vmatprep.subr.bf16.mxu0 0
      %1077 = vmatpush1.bf16.msra.mxu0 0
      %1078 = vmatprep.subr.bf16.mxu0 0
      %1079 = vmatpush1.bf16.msra.mxu0 0
      %1080 = vmatprep.subr.bf16.mxu0 0
      %1081 = vmatpush1.bf16.msra.mxu0 0
      %1082 = vmatprep.subr.bf16.mxu0 0
      %1083 = vmatpush1.bf16.msra.mxu0 0
      %1084 = vmatprep.subr.bf16.mxu0 0
      %1085 = vmatpush1.bf16.msra.mxu0 0
      %1086 = vmatprep.subr.bf16.mxu0 0
      %1087 = vmatpush1.bf16.msra.mxu0 0
      %1088 = vmatprep.subr.bf16.mxu0 0
      %1089 = vmatpush1.bf16.msra.mxu0 0
      %1090 = vmatprep.subr.bf16.mxu0 0
      %1091 = vmatpush1.bf16.msra.mxu0 0
      %1092 = vmatprep.mubr.bf16.mxu0 0
      %1093 = vmatmul.mubr.bf16.gmra.mrb[0].mxu0 %v1058
      %v1094 = vpop.f32.mrb[0].mxu0
      %v1095 = vadd.f32 0.0, %v1094
      %v1096 = vpop.f32.mrb[0].mxu0
      %v1097 = vpop.f32.mrb[0].mxu0
      %v1098 = vadd.f32 0.0, %v1097
      %v1099 = vpop.f32.mrb[0].mxu0
      %1100 = vdwg.mxu0
      %1101 = vmatprep.subr.bf16.mxu0 0
      %1102 = vmatpush1.bf16.xpose.msra.mxu0 %v1058
      %1103 = vmatprep.subr.bf16.mxu0 0
      %1104 = vmatpush1.bf16.xpose.msra.mxu0 0
      %1105 = vmatprep.subr.bf16.mxu0 0
      %1106 = vmatpush1.bf16.xpose.msra.mxu0 0
      %1107 = vmatprep.subr.bf16.mxu0 0
      %1108 = vmatpush1.bf16.xpose.msra.mxu0 0
      %1109 = vmatprep.subr.bf16.mxu0 0
      %1110 = vmatpush1.bf16.xpose.msra.mxu0 0
      %1111 = vmatprep.subr.bf16.mxu0 0
      %1112 = vmatpush1.bf16.xpose.msra.mxu0 0
      %1113 = vmatprep.subr.bf16.mxu0 0
      %1114 = vmatpush1.bf16.xpose.msra.mxu0 0
      %1115 = vmatprep.subr.bf16.mxu0 0
      %1116 = vmatpush1.bf16.xpose.msra.mxu0 0
      %1117 = vmatprep.subr.bf16.mxu0 0
      %1118 = vmatpush1.bf16.xpose.msra.mxu0 0
      %1119 = vmatprep.subr.bf16.mxu0 0
      %1120 = vmatpush1.bf16.xpose.msra.mxu0 0
      %1121 = vmatprep.subr.bf16.mxu0 0
      %1122 = vmatpush1.bf16.xpose.msra.mxu0 0
      %1123 = vmatprep.subr.bf16.mxu0 0
      %1124 = vmatpush1.bf16.xpose.msra.mxu0 0
      %1125 = vmatprep.subr.bf16.mxu0 0
      %1126 = vmatpush1.bf16.xpose.msra.mxu0 0
      %1127 = vmatprep.subr.bf16.mxu0 0
      %1128 = vmatpush1.bf16.xpose.msra.mxu0 0
      %1129 = vmatprep.subr.bf16.mxu0 0
      %1130 = vmatpush1.bf16.xpose.msra.mxu0 0
      %1131 = vmatprep.subr.bf16.mxu0 0
      %1132 = vmatpush1.bf16.xpose.msra.mxu0 0
      %1133 = vmatprep.mubr.bf16.mxu0 0
      %1134 = vmatmul.mubr.bf16.gmra.mrb[0].mxu0 %v1058
      %v1135 = vpop.f32.mrb[0].mxu0
      %v1136 = vadd.f32 0.0, %v1135
      %v1137 = vpop.f32.mrb[0].mxu0
      %v1138 = vpop.f32.mrb[0].mxu0
      %v1139 = vadd.f32 0.0, %v1138
      %v1140 = vpop.f32.mrb[0].mxu0
      %1141 = vdwg.mxu0
      %v1142 = vpack.c.bf16 %v1139, %v1136
      %v1143 = vpack.c.bf16 %v782, %v781
      %v1144 = vmul.f32 %v781, %v1095
      %v1145 = vmul.f32 %v782, %v1098
      %vm1146 = vcmask 130048
      %v1148 = vsel %vm1146, %v1142, 0
      %1150 = vmatprep.subr.bf16.mxu0 0
      %1151 = vmatpush1.bf16.msra.mxu0 %v1143
      %1152 = vmatprep.subr.bf16.mxu0 0
      %1153 = vmatpush1.bf16.msra.mxu0 0
      %1154 = vmatprep.subr.bf16.mxu0 0
      %1155 = vmatpush1.bf16.msra.mxu0 0
      %1156 = vmatprep.subr.bf16.mxu0 0
      %1157 = vmatpush1.bf16.msra.mxu0 0
      %1158 = vmatprep.subr.bf16.mxu0 0
      %1159 = vmatpush1.bf16.msra.mxu0 0
      %1160 = vmatprep.subr.bf16.mxu0 0
      %1161 = vmatpush1.bf16.msra.mxu0 0
      %1162 = vmatprep.subr.bf16.mxu0 0
      %1163 = vmatpush1.bf16.msra.mxu0 0
      %1164 = vmatprep.subr.bf16.mxu0 0
      %1165 = vmatpush1.bf16.msra.mxu0 0
      %1166 = vmatprep.subr.bf16.mxu0 0
      %1167 = vmatpush1.bf16.msra.mxu0 0
      %1168 = vmatprep.subr.bf16.mxu0 0
      %1169 = vmatpush1.bf16.msra.mxu0 0
      %1170 = vmatprep.subr.bf16.mxu0 0
      %1171 = vmatpush1.bf16.msra.mxu0 0
      %1172 = vmatprep.subr.bf16.mxu0 0
      %1173 = vmatpush1.bf16.msra.mxu0 0
      %1174 = vmatprep.subr.bf16.mxu0 0
      %1175 = vmatpush1.bf16.msra.mxu0 0
      %1176 = vmatprep.subr.bf16.mxu0 0
      %1177 = vmatpush1.bf16.msra.mxu0 0
      %1178 = vmatprep.subr.bf16.mxu0 0
      %1179 = vmatpush1.bf16.msra.mxu0 0
      %1180 = vmatprep.subr.bf16.mxu0 0
      %1181 = vmatpush1.bf16.msra.mxu0 0
      %1182 = vmatprep.mubr.bf16.mxu0 0
      %1183 = vmatmul.mubr.bf16.gmra.mrb[0].mxu0 %v1148
      %v1184 = vpop.f32.mrb[0].mxu0
      %v1185 = vadd.f32 1e-06, %v1184
      %v1186 = vpop.f32.mrb[0].mxu0
      %v1187 = vpop.f32.mrb[0].mxu0
      %v1188 = vadd.f32 1e-06, %v1187
      %v1189 = vpop.f32.mrb[0].mxu0
      %1190 = vdwg.mxu0
      %v1191 = vrcp.pop %v1185
      %v1192 = vrcp.pop %v1188
      %v1193 = vmul.f32 %v1144, %v1191
      %v1194 = vmul.f32 %v1145, %v1192
      %1195 = vxpose.xlu0.c.b16.start [1/8] %v1056, 128
      %1196 = vxpose.xlu0.c.b16.cont [2/8] 0, 128
      %1197 = vxpose.xlu0.c.b16.cont [3/8] 0, 128
      %1198 = vxpose.xlu0.c.b16.cont [4/8] 0, 128
      %1199 = vxpose.xlu0.c.b16.cont [5/8] 0, 128
      %1200 = vxpose.xlu0.c.b16.cont [6/8] 0, 128
      %1201 = vxpose.xlu0.c.b16.cont [7/8] 0, 128
      %1202 = vxpose.xlu0.c.b16.end [8/8] 0, 128
      %v1203 = vpop.trf.xlu0
      %v1204 = vpop.trf.xlu0
      %v1205 = vpop.trf.xlu0
      %v1206 = vpop.trf.xlu0
      %v1207 = vpop.trf.xlu0
      %v1208 = vpop.trf.xlu0
      %v1209 = vpop.trf.xlu0
      %v1210 = vpop.trf.xlu0
      %v1211 = vpack.c.bf16 %v1194, %v1193
      %v1213 = vsel %vm1146, %v1203, 0
      %v1216 = vsel %vm1146, %v1204, 0
      %1218 = vmatprep.subr.bf16.mxu0 0
      %1219 = vmatpush1.bf16.msra.mxu0 %v1211
      %1220 = vmatprep.subr.bf16.mxu0 0
      %1221 = vmatpush1.bf16.msra.mxu0 0
      %1222 = vmatprep.subr.bf16.mxu0 0
      %1223 = vmatpush1.bf16.msra.mxu0 0
      %1224 = vmatprep.subr.bf16.mxu0 0
      %1225 = vmatpush1.bf16.msra.mxu0 0
      %1226 = vmatprep.subr.bf16.mxu0 0
      %1227 = vmatpush1.bf16.msra.mxu0 0
      %1228 = vmatprep.subr.bf16.mxu0 0
      %1229 = vmatpush1.bf16.msra.mxu0 0
      %1230 = vmatprep.subr.bf16.mxu0 0
      %1231 = vmatpush1.bf16.msra.mxu0 0
      %1232 = vmatprep.subr.bf16.mxu0 0
      %1233 = vmatpush1.bf16.msra.mxu0 0
      %1234 = vmatprep.subr.bf16.mxu0 0
      %1235 = vmatpush1.bf16.msra.mxu0 0
      %1236 = vmatprep.subr.bf16.mxu0 0
      %1237 = vmatpush1.bf16.msra.mxu0 0
      %1238 = vmatprep.subr.bf16.mxu0 0
      %1239 = vmatpush1.bf16.msra.mxu0 0
      %1240 = vmatprep.subr.bf16.mxu0 0
      %1241 = vmatpush1.bf16.msra.mxu0 0
      %1242 = vmatprep.subr.bf16.mxu0 0
      %1243 = vmatpush1.bf16.msra.mxu0 0
      %1244 = vmatprep.subr.bf16.mxu0 0
      %1245 = vmatpush1.bf16.msra.mxu0 0
      %1246 = vmatprep.subr.bf16.mxu0 0
      %1247 = vmatpush1.bf16.msra.mxu0 0
      %1248 = vmatprep.subr.bf16.mxu0 0
      %1249 = vmatpush1.bf16.msra.mxu0 0
      %1250 = vmatprep.mubr.bf16.mxu0 0
      %1251 = vmatmul.mubr.bf16.gmra.mrb[0].mxu0 %v1213
      %v1252 = vpop.f32.mrb[0].mxu0
      %v1253 = vadd.f32 0.0, %v1252
      %v1254 = vpop.f32.mrb[0].mxu0
      %v1255 = vpop.f32.mrb[0].mxu0
      %v1256 = vadd.f32 0.0, %v1255
      %v1257 = vpop.f32.mrb[0].mxu0
      %1258 = vmatprep.mubr.bf16.mxu0 0
      %1259 = vmatmul.mubr.bf16.gmra.mrb[0].mxu0 %v1216
      %v1260 = vpop.f32.mrb[0].mxu0
      %v1261 = vadd.f32 0.0, %v1260
      %v1262 = vpop.f32.mrb[0].mxu0
      %v1263 = vpop.f32.mrb[0].mxu0
      %v1264 = vadd.f32 0.0, %v1263
      %v1265 = vpop.f32.mrb[0].mxu0
      %1266 = vdwg.mxu0
      %1267 = vst [vmem:[%s198] sm:$0xff] %v1253
      %1268 = vst [vmem:[%s198 + $0x8] sm:$0xff] %v1256
      %1269 = vst [vmem:[%s198 + $0x10] sm:$0xff] %v1261
      %1270 = vst [vmem:[%s198 + $0x18] sm:$0xff] %v1264
      %1271 = vst.msk [vmem:[%s203] sm:$0xff] %vm215, %v779
      %1272 = vst.msk [vmem:[%s203 + $0x8] sm:$0xff] %vm215, %v780
      %p1273 = scmp.lt.s32.totalorder %s15, 1
      %s1274 = scalar_select %p1273, %s15, 1
      %s1275 = smul.addr %s1274, 4
      %s1276 = smul.addr %s1275, 8
      %s1277 = scalar_lea.vmem %s2, %s1276
      %p1278 = scmp.lt.s32.totalorder %s15, 1
      %s1279 = scalar_select %p1278, %s15, 1
      %s1280 = smul.addr %s1279, 2
      %s1281 = smul.addr %s1280, 8
      %s1282 = scalar_lea.vmem %s3, %s1281
      // Predicated region
      $region36: #{matrix_decomposition_2d.1} parent=27 // pred_check
        %p1283 = pneg %p85
      $region37: #{matrix_decomposition_2d.1} parent=27 // pred_check_branch
        %1285 = sbr.rel (%p1283) target = $region39
      $region38: #{matrix_decomposition_2d.1} parent=27 // pred_region
        _
      $region39: #{matrix_decomposition_2d.1} parent=27 // pred_fallthru
        _
      // Predicated region
      $region40: #{matrix_decomposition_2d.1} parent=27 // pred_check
        %p1286 = pneg %p111
      $region41: #{matrix_decomposition_2d.1} parent=27 // pred_check_branch
        %1288 = sbr.rel (%p1286) target = $region43
      $region42: #{matrix_decomposition_2d.1} parent=27 // pred_region
        _
      $region43: #{matrix_decomposition_2d.1} parent=27 // pred_fallthru
        _
    $region28: #{matrix_decomposition_2d.1} parent=5 // pred_fallthru
      _
    %p1289 = scmp.le.s32.totalorder 2, %s10
    // Predicated region
    $region44: #{matrix_decomposition_2d.1} parent=5 // pred_check
      %p1290 = pneg %p1289
    $region45: #{matrix_decomposition_2d.1} parent=5 // pred_check_branch
      %1292 = sbr.rel (%p1290) target = $region47
    $region46: #{matrix_decomposition_2d.1} parent=5 // pred_region
      %s1293 = ssub.s32 %s10, 2
      // Predicated region
      $region48: #{matrix_decomposition_2d.1} parent=46 // pred_check
        %p1294 = pneg %p91
      $region49: #{matrix_decomposition_2d.1} parent=46 // pred_check_branch
        %1296 = sbr.rel (%p1294) target = $region51
      $region50: #{matrix_decomposition_2d.1} parent=46 // pred_region
        %p1297 = scmp.lt.s32.totalorder %s16, 1
        %s1298 = scalar_select %p1297, %s16, 1
        %s1299 = smul.addr %s1298, 4
        %s1300 = smul.addr %s1299, 8
        %s1301 = scalar_lea.vmem %s2, %s1300
      $region51: #{matrix_decomposition_2d.1} parent=46 // pred_fallthru
        _
      // Predicated region
      $region52: #{matrix_decomposition_2d.1} parent=46 // pred_check
        %p1302 = pneg %p117
      $region53: #{matrix_decomposition_2d.1} parent=46 // pred_check_branch
        %1304 = sbr.rel (%p1302) target = $region55
      $region54: #{matrix_decomposition_2d.1} parent=46 // pred_region
        %p1305 = scmp.lt.s32.totalorder %s16, 1
        %s1306 = scalar_select %p1305, %s16, 1
        %s1307 = smul.addr %s1306, 2
        %s1308 = smul.addr %s1307, 8
        %s1309 = scalar_lea.vmem %s3, %s1308
      $region55: #{matrix_decomposition_2d.1} parent=46 // pred_fallthru
        _
    $region47: #{matrix_decomposition_2d.1} parent=5 // pred_fallthru
      _
  $region6: #{matrix_decomposition_2d.1} parent=0 // loop_footer
    %s14 = sadd.s32 1, %s10
  $region7: #{matrix_decomposition_2d.1} parent=0 // loop_footer_branch
    %9 = sbr.rel target = $region3
  $region8: #{matrix_decomposition_2d.1} parent=0 // loop_exit
    _

</llo_original>
